<compile_context>
chip_gen: v7x
topology: tpu7x:2x2x1
jax: 0.10.0
libtpu: 0.0.40
codegen_flags: <defaults>
</compile_context>

<pallas_src>
import jax
import jax.numpy as jnp
from jax import lax
from jax.experimental import pallas as pl
from jax.experimental.pallas import tpu as pltpu


def _self_attn_kernel(x_ref, wt_ref, bt_ref, wphi_ref, bphi_ref,
                      wg_ref, bg_ref, wa_ref, ba_ref,
                      out_ref, phiT_s, g_s):
    f32, bf16 = jnp.float32, jnp.bfloat16

    qi = pl.program_id(1)
    C8, N4 = phiT_s.shape
    TN = out_ref.shape[1]

    # ---- once per batch element: fused phi/g 1x1 conv + 2x2 maxpool ---------
    # Blocked over the 4 window row-blocks (statically unrolled): avoids a full
    # (N, C) bf16 copy of x and a (N, C8+C2) f32 intermediate in one step.
    @pl.when(qi == 0)
    def _():
        phiT = None
        gacc = None
        for r in range(4):
            xr = x_ref[0, r * N4:(r + 1) * N4, :].astype(bf16)          # (N4, C)
            # phi^T directly: (C8, C) x (N4, C) contracting channels -> (C8, N4)
            pt = lax.dot_general(wphi_ref[...], xr,
                                 dimension_numbers=(((1,), (1,)), ((), ())),
                                 preferred_element_type=f32)
            gr = jnp.dot(xr, wg_ref[...], preferred_element_type=f32)   # (N4, C2)
            phiT = pt if phiT is None else jnp.maximum(phiT, pt)
            gacc = gr if gacc is None else jnp.maximum(gacc, gr)
        # per-channel bias commutes with max -> add after pooling
        phiT_s[...] = (phiT + bphi_ref[...].astype(f32)).astype(bf16)   # (C8, N4)
        g_s[...] = (gacc + bg_ref[...].astype(f32)).astype(bf16)        # (N4, C2)

    # ---- per query tile ------------------------------------------------------
    start = pl.multiple_of(qi * TN, TN)
    x_tile = x_ref[0, pl.ds(start, TN), :]                              # (TN, C) f32
    x_bf = x_tile.astype(bf16)

    # theta: 1x1 conv -> (TN, C8)
    theta = (jnp.dot(x_bf, wt_ref[...], preferred_element_type=f32)
             + bt_ref[...].astype(f32)).astype(bf16)

    # attention logits (TN, N4): standard contraction against pre-transposed phi
    logits = jnp.dot(theta, phiT_s[...], preferred_element_type=f32)

    # softmax over N4 in f32; normalization deferred past the attn @ g matmul
    m = jnp.max(logits, axis=-1, keepdims=True)
    e = jnp.exp(logits - m)                                             # e <= 1
    inv_l = pl.reciprocal(jnp.sum(e, axis=-1, keepdims=True), approx=True)

    # (TN, N4) @ (N4, C2) with unnormalized weights, then scale the small result
    attn_g = jnp.dot(e.astype(bf16), g_s[...], preferred_element_type=f32) * inv_l

    # final 1x1 conv back to C channels; sigma already folded into wa/ba
    o = (jnp.dot(attn_g.astype(bf16), wa_ref[...], preferred_element_type=f32)
         + ba_ref[...].astype(f32))                                     # (TN, C)

    out_ref[0] = (x_tile + o).astype(out_ref.dtype)


def _pick_vmem_limit():
    # v7x: 64 MiB physical VMEM per TensorCore; v5e/v6e: 128 MiB.
    cap = 128 * 1024 * 1024
    try:
        cap = int(getattr(pltpu.get_tpu_info(), "vmem_capacity_bytes", cap))
    except Exception:
        pass
    # leave ~25% headroom for Mosaic internal scratch, cap at 100 MiB
    return int(min(100 * 1024 * 1024, cap - cap // 4))


def self_attn_pallas(x_nchw, params, tile_n=512):
    """x_nchw: (B, C, H, W) float32. params: reference-layout weights (see make_params)."""
    B, C, H, W = x_nchw.shape
    assert H % 2 == 0 and W % 2 == 0 and C % 8 == 0
    N = H * W
    N4 = (H // 2) * (W // 2)
    C8, C2 = C // 8, C // 2

    # Query-tile size: largest multiple of 8 <= tile_n that divides N.
    # (For very large maps on v7x, pass a smaller tile_n, e.g. 256.)
    tn = None
    cap = min(tile_n, N)
    for cand in range(cap - cap % 8, 7, -8):
        if N % cand == 0:
            tn = cand
            break
    TN = tn if tn is not None else N

    # ---- layout glue: NCHW -> channels-last, window-block row order ----------
    # row n' = (rh*2 + rw) * N4 + hh*(W//2) + ww  holds pixel (2*hh+rh, 2*ww+rw)
    x_perm = (jnp.transpose(x_nchw, (0, 2, 3, 1))            # (B, H, W, C)
              .reshape(B, H // 2, 2, W // 2, 2, C)
              .transpose(0, 2, 4, 1, 3, 5)                   # (B, 2, 2, H/2, W/2, C)
              .reshape(B, N, C))

    # ---- pack weights (bf16 matmul operands, f32 biases); fold sigma ---------
    f32, bf16 = jnp.float32, jnp.bfloat16
    sigma = jnp.asarray(params["sigma"], f32)
    wt = params["Wt"].T.astype(bf16)                         # (C, C8)
    bt = params["bt"].reshape(1, C8).astype(f32)
    wphi = params["Wp"].astype(bf16)                         # (C8, C)
    bphi = params["bp"].reshape(C8, 1).astype(f32)
    wg = params["Wg"].T.astype(bf16)                         # (C, C2)
    bg = params["bg"].reshape(1, C2).astype(f32)
    # out = x + sigma * (attn_g @ Wa^T + ba)  ==  x + attn_g @ (sigma*Wa^T) + sigma*ba
    wa = (sigma * params["Wa"].T).astype(bf16)               # (C2, C)
    ba = (sigma * params["ba"]).reshape(1, C).astype(f32)

    full = lambda shape: pl.BlockSpec(shape, lambda b, qi, _s=shape: (0,) * len(_s))

    out_perm = pl.pallas_call(
        _self_attn_kernel,
        out_shape=jax.ShapeDtypeStruct((B, N, C), jnp.float32),
        grid=(B, N // TN),
        in_specs=[
            # x: resident per batch element (same block index across qi)
            pl.BlockSpec((1, N, C), lambda b, qi: (b, 0, 0)),
            full((C, C8)), full((1, C8)),
            full((C8, C)), full((C8, 1)),
            full((C, C2)), full((1, C2)),
            full((C2, C)), full((1, C)),
        ],
        out_specs=pl.BlockSpec((1, TN, C), lambda b, qi: (b, qi, 0)),
        scratch_shapes=[
            pltpu.VMEM((C8, N4), jnp.bfloat16),   # pooled phi^T (lane-dense, per batch)
            pltpu.VMEM((N4, C2), jnp.bfloat16),   # pooled g
        ],
        compiler_params=pltpu.CompilerParams(
            dimension_semantics=("parallel", "arbitrary"),
            vmem_limit_bytes=_pick_vmem_limit()),
    )(x_perm, wt, bt, wphi, bphi, wg, bg, wa, ba)

    # ---- inverse layout glue: window-block rows -> NCHW -----------------------
    out = (out_perm.reshape(B, 2, 2, H // 2, W // 2, C)
           .transpose(0, 5, 3, 1, 4, 2)                      # (B, C, H/2, 2, W/2, 2)
           .reshape(B, C, H, W))
    return out


# ----------------------------- reference (pure JAX, NCHW like PyTorch) -------
def self_attn_reference(x, p):
    B, C, H, W = x.shape
    N, N4 = H * W, (H // 2) * (W // 2)
    conv1x1 = lambda v, w, b: jnp.einsum('bchw,oc->bohw', v, w) + b[None, :, None, None]
    pool2 = lambda v: v.reshape(B, -1, H // 2, 2, W // 2, 2).max(axis=(3, 5))

    theta = conv1x1(x, p["Wt"], p["bt"]).reshape(B, -1, N)
    phi = pool2(conv1x1(x, p["Wp"], p["bp"])).reshape(B, -1, N4)
    attn = jax.nn.softmax(jnp.einsum('bcn,bcm->bnm', theta, phi), axis=-1)
    g = pool2(conv1x1(x, p["Wg"], p["bg"])).reshape(B, -1, N4)
    attn_g = jnp.einsum('bcm,bnm->bcn', g, attn).reshape(B, -1, H, W)
    attn_g = conv1x1(attn_g, p["Wa"], p["ba"])
    return x + p["sigma"] * attn_g


# ----------------------------- parameter construction ------------------------
def make_params(key, C):
    C8, C2 = C // 8, C // 2
    ks = jax.random.split(key, 8)

    def sn(w):  # exact spectral normalization of the (out, in) 1x1 conv matrix
        # TODO(synk): PyTorch spectral_norm uses 1-step power iteration with a
        # random u; we use the exact largest singular value here (synthetic weights).
        s = jnp.linalg.svd(w, compute_uv=False)[0]
        return w / s

    Wt = sn(jax.random.normal(ks[0], (C8, C), jnp.float32) * 0.2)
    Wp = sn(jax.random.normal(ks[1], (C8, C), jnp.float32) * 0.2)
    Wg = sn(jax.random.normal(ks[2], (C2, C), jnp.float32) * 0.2)
    Wa = sn(jax.random.normal(ks[3], (C, C2), jnp.float32) * 0.2)
    bt = jax.random.normal(ks[4], (C8,), jnp.float32) * 0.05
    bp = jax.random.normal(ks[5], (C8,), jnp.float32) * 0.05
    bg = jax.random.normal(ks[6], (C2,), jnp.float32) * 0.05
    ba = jax.random.normal(ks[7], (C,), jnp.float32) * 0.05
    # nn.Parameter(torch.zeros(1)) -> sigma init is 0; use 0.5 here so the
    # attention branch actually contributes to the output being checked.
    sigma = jnp.float32(0.5)

    return dict(Wt=Wt, bt=bt, Wp=Wp, bp=bp, Wg=Wg, bg=bg,
                Wa=Wa, ba=ba, sigma=sigma)


if __name__ == "__main__":
    # Small but representative shapes.  C=64 keeps the test cheap (real-model
    # C >= 128 is lane-dense); tile_n=128 forces the 2-query-tile path so the
    # tiled grid and the qi==0 init path are both exercised.
    B, C, H, W = 2, 64, 16, 16
    key = jax.random.PRNGKey(0)
    kx, kp = jax.random.split(key)
    x = jax.random.normal(kx, (B, C, H, W), jnp.float32)

    params = make_params(kp, C)

    out = self_attn_pallas(x, params, tile_n=128)
    out = jax.block_until_ready(out)

    ref = self_attn_reference(x, params)
    assert out.shape == (B, C, H, W)
    # bf16 matmul operands + approx reciprocal -> loosened tolerance vs f32 reference
    assert jnp.allclose(out, ref, rtol=5e-2, atol=5e-2), (
        float(jnp.max(jnp.abs(out - ref))))
    print("KERNEL_OK")
</pallas_src>

<mosaic_0001>
module attributes {stable_mosaic.version = 11 : i64} {
  func.func @_self_attn_kernel(%arg0: i32, %arg1: i32, %arg2: memref<1x256x64xf32, #tpu.memory_space<vmem>>, %arg3: memref<64x8xbf16, #tpu.memory_space<vmem>>, %arg4: memref<1x8xf32, #tpu.memory_space<vmem>>, %arg5: memref<8x64xbf16, #tpu.memory_space<vmem>>, %arg6: memref<8x1xf32, #tpu.memory_space<vmem>>, %arg7: memref<64x32xbf16, #tpu.memory_space<vmem>>, %arg8: memref<1x32xf32, #tpu.memory_space<vmem>>, %arg9: memref<32x64xbf16, #tpu.memory_space<vmem>>, %arg10: memref<1x64xf32, #tpu.memory_space<vmem>>, %arg11: memref<1x128x64xf32, #tpu.memory_space<vmem>>, %arg12: memref<8x64xbf16, #tpu.memory_space<vmem>>, %arg13: memref<64x32xbf16, #tpu.memory_space<vmem>>) attributes {dimension_semantics = [#tpu.dimension_semantics<parallel>, #tpu.dimension_semantics<arbitrary>], iteration_bounds = array<i64: 2, 2>, scalar_prefetch = 0 : i64, scratch_operands = 2 : i64, tpu.core_type = #tpu.core_type<tc>, window_params = [{transform_indices = @transform_0, window_bounds = array<i64: 1, 256, 64>}, {pipeline_mode = #tpu.pipeline_mode<synchronous>, transform_indices = @transform_1, window_bounds = array<i64: 64, 8>}, {pipeline_mode = #tpu.pipeline_mode<synchronous>, transform_indices = @transform_2, window_bounds = array<i64: 1, 8>}, {pipeline_mode = #tpu.pipeline_mode<synchronous>, transform_indices = @transform_3, window_bounds = array<i64: 8, 64>}, {pipeline_mode = #tpu.pipeline_mode<synchronous>, transform_indices = @transform_4, window_bounds = array<i64: 8, 1>}, {pipeline_mode = #tpu.pipeline_mode<synchronous>, transform_indices = @transform_5, window_bounds = array<i64: 64, 32>}, {pipeline_mode = #tpu.pipeline_mode<synchronous>, transform_indices = @transform_6, window_bounds = array<i64: 1, 32>}, {pipeline_mode = #tpu.pipeline_mode<synchronous>, transform_indices = @transform_7, window_bounds = array<i64: 32, 64>}, {pipeline_mode = #tpu.pipeline_mode<synchronous>, transform_indices = @transform_8, window_bounds = array<i64: 1, 64>}, {transform_indices = @transform_9, window_bounds = array<i64: 1, 128, 64>}]} {
    %c0_i32 = arith.constant 0 : i32
    %0 = arith.cmpi eq, %arg1, %c0_i32 : i32
    %1 = arith.extui %0 : i1 to i32
    %c0_i32_0 = arith.constant 0 : i32
    %2 = arith.cmpi ne, %1, %c0_i32_0 : i32
    scf.if %2 {
      %c0_22 = arith.constant 0 : index
      %c0_23 = arith.constant 0 : index
      %c0_24 = arith.constant 0 : index
      %40 = vector.load %arg2[%c0_22, %c0_23, %c0_24] : memref<1x256x64xf32, #tpu.memory_space<vmem>>, vector<1x64x64xf32>
      %41 = vector.shape_cast %40 : vector<1x64x64xf32> to vector<64x64xf32>
      %42 = arith.truncf %41 : vector<64x64xf32> to vector<64x64xbf16>
      %c0_25 = arith.constant 0 : index
      %c0_26 = arith.constant 0 : index
      %43 = vector.load %arg5[%c0_25, %c0_26] : memref<8x64xbf16, #tpu.memory_space<vmem>>, vector<8x64xbf16>
      %cst_27 = arith.constant dense<0.000000e+00> : vector<8x64xf32>
      %44 = tpu.matmul %43, %42, %cst_27 {dimension_numbers = #tpu.dot_dimension_numbers<[1], [1], [0], [0], [0, 0, 1, 0], [], []>} : vector<8x64xbf16>, vector<64x64xbf16>, vector<8x64xf32> -> vector<8x64xf32>
      %c0_28 = arith.constant 0 : index
      %c0_29 = arith.constant 0 : index
      %45 = vector.load %arg7[%c0_28, %c0_29] : memref<64x32xbf16, #tpu.memory_space<vmem>>, vector<64x32xbf16>
      %cst_30 = arith.constant dense<0.000000e+00> : vector<64x32xf32>
      %46 = tpu.matmul %42, %45, %cst_30 {dimension_numbers = #tpu.dot_dimension_numbers<[1], [0], [0], [1], [0, 0, 1, 1], [], []>} : vector<64x64xbf16>, vector<64x32xbf16>, vector<64x32xf32> -> vector<64x32xf32>
      %c0_31 = arith.constant 0 : index
      %c64 = arith.constant 64 : index
      %c0_32 = arith.constant 0 : index
      %47 = vector.load %arg2[%c0_31, %c64, %c0_32] : memref<1x256x64xf32, #tpu.memory_space<vmem>>, vector<1x64x64xf32>
      %48 = vector.shape_cast %47 : vector<1x64x64xf32> to vector<64x64xf32>
      %49 = arith.truncf %48 : vector<64x64xf32> to vector<64x64xbf16>
      %c0_33 = arith.constant 0 : index
      %c0_34 = arith.constant 0 : index
      %50 = vector.load %arg5[%c0_33, %c0_34] : memref<8x64xbf16, #tpu.memory_space<vmem>>, vector<8x64xbf16>
      %cst_35 = arith.constant dense<0.000000e+00> : vector<8x64xf32>
      %51 = tpu.matmul %50, %49, %cst_35 {dimension_numbers = #tpu.dot_dimension_numbers<[1], [1], [0], [0], [0, 0, 1, 0], [], []>} : vector<8x64xbf16>, vector<64x64xbf16>, vector<8x64xf32> -> vector<8x64xf32>
      %c0_36 = arith.constant 0 : index
      %c0_37 = arith.constant 0 : index
      %52 = vector.load %arg7[%c0_36, %c0_37] : memref<64x32xbf16, #tpu.memory_space<vmem>>, vector<64x32xbf16>
      %cst_38 = arith.constant dense<0.000000e+00> : vector<64x32xf32>
      %53 = tpu.matmul %49, %52, %cst_38 {dimension_numbers = #tpu.dot_dimension_numbers<[1], [0], [0], [1], [0, 0, 1, 1], [], []>} : vector<64x64xbf16>, vector<64x32xbf16>, vector<64x32xf32> -> vector<64x32xf32>
      %54 = arith.maximumf %44, %51 : vector<8x64xf32>
      %55 = arith.maximumf %46, %53 : vector<64x32xf32>
      %c0_39 = arith.constant 0 : index
      %c128 = arith.constant 128 : index
      %c0_40 = arith.constant 0 : index
      %56 = vector.load %arg2[%c0_39, %c128, %c0_40] : memref<1x256x64xf32, #tpu.memory_space<vmem>>, vector<1x64x64xf32>
      %57 = vector.shape_cast %56 : vector<1x64x64xf32> to vector<64x64xf32>
      %58 = arith.truncf %57 : vector<64x64xf32> to vector<64x64xbf16>
      %c0_41 = arith.constant 0 : index
      %c0_42 = arith.constant 0 : index
      %59 = vector.load %arg5[%c0_41, %c0_42] : memref<8x64xbf16, #tpu.memory_space<vmem>>, vector<8x64xbf16>
      %cst_43 = arith.constant dense<0.000000e+00> : vector<8x64xf32>
      %60 = tpu.matmul %59, %58, %cst_43 {dimension_numbers = #tpu.dot_dimension_numbers<[1], [1], [0], [0], [0, 0, 1, 0], [], []>} : vector<8x64xbf16>, vector<64x64xbf16>, vector<8x64xf32> -> vector<8x64xf32>
      %c0_44 = arith.constant 0 : index
      %c0_45 = arith.constant 0 : index
      %61 = vector.load %arg7[%c0_44, %c0_45] : memref<64x32xbf16, #tpu.memory_space<vmem>>, vector<64x32xbf16>
      %cst_46 = arith.constant dense<0.000000e+00> : vector<64x32xf32>
      %62 = tpu.matmul %58, %61, %cst_46 {dimension_numbers = #tpu.dot_dimension_numbers<[1], [0], [0], [1], [0, 0, 1, 1], [], []>} : vector<64x64xbf16>, vector<64x32xbf16>, vector<64x32xf32> -> vector<64x32xf32>
      %63 = arith.maximumf %54, %60 : vector<8x64xf32>
      %64 = arith.maximumf %55, %62 : vector<64x32xf32>
      %c0_47 = arith.constant 0 : index
      %c192 = arith.constant 192 : index
      %c0_48 = arith.constant 0 : index
      %65 = vector.load %arg2[%c0_47, %c192, %c0_48] : memref<1x256x64xf32, #tpu.memory_space<vmem>>, vector<1x64x64xf32>
      %66 = vector.shape_cast %65 : vector<1x64x64xf32> to vector<64x64xf32>
      %67 = arith.truncf %66 : vector<64x64xf32> to vector<64x64xbf16>
      %c0_49 = arith.constant 0 : index
      %c0_50 = arith.constant 0 : index
      %68 = vector.load %arg5[%c0_49, %c0_50] : memref<8x64xbf16, #tpu.memory_space<vmem>>, vector<8x64xbf16>
      %cst_51 = arith.constant dense<0.000000e+00> : vector<8x64xf32>
      %69 = tpu.matmul %68, %67, %cst_51 {dimension_numbers = #tpu.dot_dimension_numbers<[1], [1], [0], [0], [0, 0, 1, 0], [], []>} : vector<8x64xbf16>, vector<64x64xbf16>, vector<8x64xf32> -> vector<8x64xf32>
      %c0_52 = arith.constant 0 : index
      %c0_53 = arith.constant 0 : index
      %70 = vector.load %arg7[%c0_52, %c0_53] : memref<64x32xbf16, #tpu.memory_space<vmem>>, vector<64x32xbf16>
      %cst_54 = arith.constant dense<0.000000e+00> : vector<64x32xf32>
      %71 = tpu.matmul %67, %70, %cst_54 {dimension_numbers = #tpu.dot_dimension_numbers<[1], [0], [0], [1], [0, 0, 1, 1], [], []>} : vector<64x64xbf16>, vector<64x32xbf16>, vector<64x32xf32> -> vector<64x32xf32>
      %72 = arith.maximumf %63, %69 : vector<8x64xf32>
      %73 = arith.maximumf %64, %71 : vector<64x32xf32>
      %c0_55 = arith.constant 0 : index
      %c0_56 = arith.constant 0 : index
      %74 = vector.load %arg6[%c0_55, %c0_56] : memref<8x1xf32, #tpu.memory_space<vmem>>, vector<8x1xf32>
      %75 = vector.broadcast %74 : vector<8x1xf32> to vector<8x64xf32>
      %76 = arith.addf %72, %75 : vector<8x64xf32>
      %77 = arith.truncf %76 : vector<8x64xf32> to vector<8x64xbf16>
      %c0_57 = arith.constant 0 : index
      %c0_58 = arith.constant 0 : index
      %78 = vector.load %arg12[%c0_57, %c0_58] : memref<8x64xbf16, #tpu.memory_space<vmem>>, vector<8x64xbf16>
      tpu.vector_store %arg12[%c0_57, %c0_58], %77 {strides = array<i32>} : memref<8x64xbf16, #tpu.memory_space<vmem>>, vector<8x64xbf16>,
      %c0_59 = arith.constant 0 : index
      %c0_60 = arith.constant 0 : index
      %79 = vector.load %arg8[%c0_59, %c0_60] : memref<1x32xf32, #tpu.memory_space<vmem>>, vector<1x32xf32>
      %80 = vector.broadcast %79 : vector<1x32xf32> to vector<64x32xf32>
      %81 = arith.addf %73, %80 : vector<64x32xf32>
      %82 = arith.truncf %81 : vector<64x32xf32> to vector<64x32xbf16>
      %c0_61 = arith.constant 0 : index
      %c0_62 = arith.constant 0 : index
      %83 = vector.load %arg13[%c0_61, %c0_62] : memref<64x32xbf16, #tpu.memory_space<vmem>>, vector<64x32xbf16>
      tpu.vector_store %arg13[%c0_61, %c0_62], %82 {strides = array<i32>} : memref<64x32xbf16, #tpu.memory_space<vmem>>, vector<64x32xbf16>,
    } else {
    }
    %c128_i32 = arith.constant 128 : i32
    %3 = arith.muli %arg1, %c128_i32 : i32
    %4 = tpu.assume_multiple %3, 128 : i32
    %c0 = arith.constant 0 : index
    %5 = arith.index_cast %4 : i32 to index
    %c0_1 = arith.constant 0 : index
    %6 = vector.load %arg2[%c0, %5, %c0_1] : memref<1x256x64xf32, #tpu.memory_space<vmem>>, vector<1x128x64xf32>
    %7 = vector.shape_cast %6 : vector<1x128x64xf32> to vector<128x64xf32>
    %8 = arith.truncf %7 : vector<128x64xf32> to vector<128x64xbf16>
    %c0_2 = arith.constant 0 : index
    %c0_3 = arith.constant 0 : index
    %9 = vector.load %arg3[%c0_2, %c0_3] : memref<64x8xbf16, #tpu.memory_space<vmem>>, vector<64x8xbf16>
    %cst = arith.constant dense<0.000000e+00> : vector<128x8xf32>
    %10 = tpu.matmul %8, %9, %cst {dimension_numbers = #tpu.dot_dimension_numbers<[1], [0], [0], [1], [0, 0, 1, 1], [], []>} : vector<128x64xbf16>, vector<64x8xbf16>, vector<128x8xf32> -> vector<128x8xf32>
    %c0_4 = arith.constant 0 : index
    %c0_5 = arith.constant 0 : index
    %11 = vector.load %arg4[%c0_4, %c0_5] : memref<1x8xf32, #tpu.memory_space<vmem>>, vector<1x8xf32>
    %12 = vector.broadcast %11 : vector<1x8xf32> to vector<128x8xf32>
    %13 = arith.addf %10, %12 : vector<128x8xf32>
    %14 = arith.truncf %13 : vector<128x8xf32> to vector<128x8xbf16>
    %c0_6 = arith.constant 0 : index
    %c0_7 = arith.constant 0 : index
    %15 = vector.load %arg12[%c0_6, %c0_7] : memref<8x64xbf16, #tpu.memory_space<vmem>>, vector<8x64xbf16>
    %cst_8 = arith.constant dense<0.000000e+00> : vector<128x64xf32>
    %16 = tpu.matmul %14, %15, %cst_8 {dimension_numbers = #tpu.dot_dimension_numbers<[1], [0], [0], [1], [0, 0, 1, 1], [], []>} : vector<128x8xbf16>, vector<8x64xbf16>, vector<128x64xf32> -> vector<128x64xf32>
    %cst_9 = arith.constant dense<0xFF800000> : vector<128xf32>
    %17 = vector.multi_reduction <maximumf>, %16, %cst_9 [1] : vector<128x64xf32> to vector<128xf32>
    %18 = vector.shape_cast %17 : vector<128xf32> to vector<128x1xf32>
    %19 = vector.broadcast %18 : vector<128x1xf32> to vector<128x64xf32>
    %20 = arith.subf %16, %19 : vector<128x64xf32>
    %21 = math.exp %20 : vector<128x64xf32>
    %cst_10 = arith.constant dense<0.000000e+00> : vector<128xf32>
    %22 = vector.multi_reduction <add>, %21, %cst_10 [1] : vector<128x64xf32> to vector<128xf32>
    %23 = vector.shape_cast %22 : vector<128xf32> to vector<128x1xf32>
    %24 = tpu.reciprocal %23 {approx = true} : vector<128x1xf32> -> vector<128x1xf32>
    %25 = arith.truncf %21 : vector<128x64xf32> to vector<128x64xbf16>
    %c0_11 = arith.constant 0 : index
    %c0_12 = arith.constant 0 : index
    %26 = vector.load %arg13[%c0_11, %c0_12] : memref<64x32xbf16, #tpu.memory_space<vmem>>, vector<64x32xbf16>
    %cst_13 = arith.constant dense<0.000000e+00> : vector<128x32xf32>
    %27 = tpu.matmul %25, %26, %cst_13 {dimension_numbers = #tpu.dot_dimension_numbers<[1], [0], [0], [1], [0, 0, 1, 1], [], []>} : vector<128x64xbf16>, vector<64x32xbf16>, vector<128x32xf32> -> vector<128x32xf32>
    %28 = vector.broadcast %24 : vector<128x1xf32> to vector<128x32xf32>
    %29 = arith.mulf %27, %28 : vector<128x32xf32>
    %30 = arith.truncf %29 : vector<128x32xf32> to vector<128x32xbf16>
    %c0_14 = arith.constant 0 : index
    %c0_15 = arith.constant 0 : index
    %31 = vector.load %arg9[%c0_14, %c0_15] : memref<32x64xbf16, #tpu.memory_space<vmem>>, vector<32x64xbf16>
    %cst_16 = arith.constant dense<0.000000e+00> : vector<128x64xf32>
    %32 = tpu.matmul %30, %31, %cst_16 {dimension_numbers = #tpu.dot_dimension_numbers<[1], [0], [0], [1], [0, 0, 1, 1], [], []>} : vector<128x32xbf16>, vector<32x64xbf16>, vector<128x64xf32> -> vector<128x64xf32>
    %c0_17 = arith.constant 0 : index
    %c0_18 = arith.constant 0 : index
    %33 = vector.load %arg10[%c0_17, %c0_18] : memref<1x64xf32, #tpu.memory_space<vmem>>, vector<1x64xf32>
    %34 = vector.broadcast %33 : vector<1x64xf32> to vector<128x64xf32>
    %35 = arith.addf %32, %34 : vector<128x64xf32>
    %36 = arith.addf %7, %35 : vector<128x64xf32>
    %c0_19 = arith.constant 0 : index
    %c0_20 = arith.constant 0 : index
    %c0_21 = arith.constant 0 : index
    %37 = vector.load %arg11[%c0_19, %c0_20, %c0_21] : memref<1x128x64xf32, #tpu.memory_space<vmem>>, vector<1x128x64xf32>
    %38 = vector.shape_cast %37 : vector<1x128x64xf32> to vector<128x64xf32>
    %39 = vector.shape_cast %36 : vector<128x64xf32> to vector<1x128x64xf32>
    tpu.vector_store %arg11[%c0_19, %c0_20, %c0_21], %39 {strides = array<i32>} : memref<1x128x64xf32, #tpu.memory_space<vmem>>, vector<1x128x64xf32>,
    return
  }
  func.func @transform_0(%arg0: i32, %arg1: i32) -> (i32, i32, i32) {
    %c0_i32 = arith.constant 0 : i32
    %c0_i32_0 = arith.constant 0 : i32
    %c0_i32_1 = arith.constant 0 : i32
    return %arg0, %c0_i32, %c0_i32_0 : i32, i32, i32
  }
  func.func @transform_1(%arg0: i32, %arg1: i32) -> (i32, i32) {
    %c0_i32 = arith.constant 0 : i32
    %c0_i32_0 = arith.constant 0 : i32
    %c0_i32_1 = arith.constant 0 : i32
    return %c0_i32, %c0_i32_0 : i32, i32
  }
  func.func @transform_2(%arg0: i32, %arg1: i32) -> (i32, i32) {
    %c0_i32 = arith.constant 0 : i32
    %c0_i32_0 = arith.constant 0 : i32
    %c0_i32_1 = arith.constant 0 : i32
    return %c0_i32, %c0_i32_0 : i32, i32
  }
  func.func @transform_3(%arg0: i32, %arg1: i32) -> (i32, i32) {
    %c0_i32 = arith.constant 0 : i32
    %c0_i32_0 = arith.constant 0 : i32
    %c0_i32_1 = arith.constant 0 : i32
    return %c0_i32, %c0_i32_0 : i32, i32
  }
  func.func @transform_4(%arg0: i32, %arg1: i32) -> (i32, i32) {
    %c0_i32 = arith.constant 0 : i32
    %c0_i32_0 = arith.constant 0 : i32
    %c0_i32_1 = arith.constant 0 : i32
    return %c0_i32, %c0_i32_0 : i32, i32
  }
  func.func @transform_5(%arg0: i32, %arg1: i32) -> (i32, i32) {
    %c0_i32 = arith.constant 0 : i32
    %c0_i32_0 = arith.constant 0 : i32
    %c0_i32_1 = arith.constant 0 : i32
    return %c0_i32, %c0_i32_0 : i32, i32
  }
  func.func @transform_6(%arg0: i32, %arg1: i32) -> (i32, i32) {
    %c0_i32 = arith.constant 0 : i32
    %c0_i32_0 = arith.constant 0 : i32
    %c0_i32_1 = arith.constant 0 : i32
    return %c0_i32, %c0_i32_0 : i32, i32
  }
  func.func @transform_7(%arg0: i32, %arg1: i32) -> (i32, i32) {
    %c0_i32 = arith.constant 0 : i32
    %c0_i32_0 = arith.constant 0 : i32
    %c0_i32_1 = arith.constant 0 : i32
    return %c0_i32, %c0_i32_0 : i32, i32
  }
  func.func @transform_8(%arg0: i32, %arg1: i32) -> (i32, i32) {
    %c0_i32 = arith.constant 0 : i32
    %c0_i32_0 = arith.constant 0 : i32
    %c0_i32_1 = arith.constant 0 : i32
    return %c0_i32, %c0_i32_0 : i32, i32
  }
  func.func @transform_9(%arg0: i32, %arg1: i32) -> (i32, i32, i32) {
    %c0_i32 = arith.constant 0 : i32
    %c0_i32_0 = arith.constant 0 : i32
    return %arg0, %arg1, %c0_i32 : i32, i32, i32
  }
}

</mosaic_0001>

<llo_original>
// kernel: tpu_custom_call.1
$region0: #{tpu_custom_call.1}
  #allocation0 [shape = 'u32[]', space=smem, size = 0x4, offset = 0x4, fixed_abs, tag = 'smem constant byte address 0x4 - core index']
  #allocation1 [shape = 'u32[144,128]{1,0:T(1,128)}', space=vmem, size = 0x12000, scoped, tag = 'internal scratch']
  #allocation2 [shape = 'bf16[8,64]{1,0:T(8,128)(2,1)}', space=vmem, size = 0x800, scoped, tag = 'scratch operand']
  #allocation3 [shape = 'bf16[64,32]{1,0:T(16,128)(2,1)}', space=vmem, size = 0x4000, scoped, tag = 'scratch operand']
  %s0 = inlined_call_operand.hbm [shape: f32[2,256,64], index: 0, kind: input, shape index: {}]
  %s1 = inlined_call_operand.hbm [shape: bf16[64,8], index: 1, kind: input, shape index: {}]
  %s2 = inlined_call_operand.hbm [shape: f32[1,8], index: 2, kind: input, shape index: {}]
  %s3 = inlined_call_operand.hbm [shape: bf16[8,64], index: 3, kind: input, shape index: {}]
  %s4 = inlined_call_operand.hbm [shape: f32[8,1], index: 4, kind: input, shape index: {}]
  %s5 = inlined_call_operand.hbm [shape: bf16[64,32], index: 5, kind: input, shape index: {}]
  %s6 = inlined_call_operand.hbm [shape: f32[1,32], index: 6, kind: input, shape index: {}]
  %s7 = inlined_call_operand.hbm [shape: bf16[32,64], index: 7, kind: input, shape index: {}]
  %s8 = inlined_call_operand.hbm [shape: f32[1,64], index: 8, kind: input, shape index: {}]
  %s9 = inlined_call_operand.hbm [shape: f32[2,256,64], index: 9, kind: output, shape index: {}]
  %s10 = sld [smem:[#allocation0]]
  $region109: #{tpu_custom_call.1} parent=0
    _
  %s12 = ssub.s32 1, %s10
  %s13 = scalar_select 0, %s12, %s10
  $region1: #{tpu_custom_call.1} parent=0
    #allocation4 [shape = 'u8[262144]{0}', space=vmem, size = 0x40000, scoped, tag = 'input window, operand 0']
    #allocation5 [shape = 's32[2]{0}', space=sflag, size = 0x8, scoped, tag = 'scoped memory for tpu_custom_call.1']
    #allocation6 [shape = 's32[2]{0}', space=sflag, size = 0x8, scoped, tag = 'scoped memory for tpu_custom_call.1']
    #allocation7 [shape = 'u8[16384]{0}', space=vmem, size = 0x4000, scoped, tag = 'input window, operand 1, single buffered']
    #allocation8 [shape = 's32[1]{0}', space=sflag, size = 0x4, scoped, tag = 'scoped memory for tpu_custom_call.1']
    #allocation9 [shape = 'u8[512]{0}', space=vmem, size = 0x400, scoped, tag = 'input window, operand 2, single buffered']
    #allocation10 [shape = 'u8[2048]{0}', space=vmem, size = 0x800, scoped, tag = 'input window, operand 3, single buffered']
    #allocation11 [shape = 's32[1]{0}', space=sflag, size = 0x4, scoped, tag = 'scoped memory for tpu_custom_call.1']
    #allocation12 [shape = 'u8[4096]{0}', space=vmem, size = 0x1000, scoped, tag = 'input window, operand 4, single buffered']
    #allocation13 [shape = 'u8[16384]{0}', space=vmem, size = 0x4000, scoped, tag = 'input window, operand 5, single buffered']
    #allocation14 [shape = 's32[1]{0}', space=sflag, size = 0x4, scoped, tag = 'scoped memory for tpu_custom_call.1']
    #allocation15 [shape = 'u8[512]{0}', space=vmem, size = 0x400, scoped, tag = 'input window, operand 6, single buffered']
    #allocation16 [shape = 'u8[8192]{0}', space=vmem, size = 0x2000, scoped, tag = 'input window, operand 7, single buffered']
    #allocation17 [shape = 's32[1]{0}', space=sflag, size = 0x4, scoped, tag = 'scoped memory for tpu_custom_call.1']
    #allocation18 [shape = 'u8[512]{0}', space=vmem, size = 0x400, scoped, tag = 'input window, operand 8, single buffered']
    #allocation19 [shape = 'u8[131072]{0}', space=vmem, size = 0x20000, scoped, tag = 'output window, operand 0']
    %14 = vsyncpa [#allocation5], 0
    %s15 = scalar_lea.sflag [#allocation5], 1
    %16 = vsyncpa %s15, 0
    %17 = vsyncpa [#allocation8], 0
    %18 = vsyncpa [#allocation11], 0
    %19 = vsyncpa [#allocation14], 0
    %20 = vsyncpa [#allocation17], 0
    %21 = vsyncpa [#allocation6], 0
    %s22 = scalar_lea.sflag [#allocation6], 1
    %23 = vsyncpa %s22, 0
    loop: start=0, step=1, limit=6
    $region2: #{tpu_custom_call.1} parent=1 // loop_pre_header
      _
    $region3: #{tpu_custom_call.1} parent=1 // loop_header
      %s25 = sphi 0, %s29
      %p26 = scmp.ge.s32.totalorder %s25, 6
      %s32 = sphi 0, %s44
      %s33 = sphi 0, %s40
      %s34 = sphi 0, %s32
      %s35 = sphi 0, %s33
      %s36 = sphi 0, %s34
      %s37 = sphi 0, %s35
      %s47 = sphi 0, %s49
      %s50 = sphi 0, %s47
      %s51 = sphi 0, %s50
      %s67 = sphi 0, %s51
      %s71 = sphi 0, %s71
      %s73 = sphi 0, %s71
      %s74 = sphi 0, %s73
      %s88 = sphi 0, %s74
      %s92 = sphi 0, %s92
      %s94 = sphi 0, %s92
      %s95 = sphi 0, %s94
      %s109 = sphi 0, %s95
      %s113 = sphi 0, %s113
      %s115 = sphi 0, %s113
      %s116 = sphi 0, %s115
      %s130 = sphi 0, %s116
      %s134 = sphi 0, %s134
      %s136 = sphi 0, %s134
      %s137 = sphi 0, %s136
      %s151 = sphi 0, %s137
      %s155 = sphi 0, %s155
      %s157 = sphi 0, %s155
      %s158 = sphi 0, %s157
      %s172 = sphi 0, %s158
      %s176 = sphi 0, %s176
      %s178 = sphi 0, %s176
      %s179 = sphi 0, %s178
      %s193 = sphi 0, %s179
      %s197 = sphi 0, %s197
      %s199 = sphi 0, %s197
      %s200 = sphi 0, %s199
      %s214 = sphi 0, %s200
      %s218 = sphi 0, %s218
      %s220 = sphi 0, %s218
      %s221 = sphi 0, %s220
      %s235 = sphi 0, %s221
      %s243 = sphi 0, %s245
      %s246 = sphi 0, %s243
      %s247 = sphi 0, %s246
      %s263 = sphi 0, %s247
    $region4: #{tpu_custom_call.1} parent=1 // loop_header_branch
      %28 = sbr.rel (%p26) target = $region8
    $region5: #{tpu_custom_call.1} parent=1 // loop_body
      %s30 = ssub.s32 %s25, 1
      %s31 = ssub.s32 %s25, 2
      %s38 = sadd.s32 1, %s33
      %p39 = scmp.ge.s32.totalorder %s38, 2
      %s40 = scalar_select %p39, 0, %s38
      %s41 = sadd.s32 1, %s32
      %s42 = scalar_select %p39, %s41, %s32
      %p43 = scmp.ge.s32.totalorder %s42, 2
      %s44 = scalar_select %p43, 0, %s42
      %s45 = ssub.s32 %s32, %s44
      %p46 = scmp.eq.s32.totalorder %s45, 0
      %s48 = sadd.s32 %s47, 1
      %s49 = scalar_select %p46, %s47, %s48
      %p52 = pneg %p46
      %p53 = scmp.eq.s32.totalorder %s25, 3
      %p54 = por %p52, %p53
      %p55 = scmp.ne.s32.totalorder %s47, %s50
      %p56 = scmp.eq.s32.totalorder %s25, 0
      %p57 = por %p55, %p56
      %p58 = scmp.ne.s32.totalorder %s47, %s50
      %p59 = scmp.eq.s32.totalorder %s30, 3
      %p60 = por %p58, %p59
      %p61 = scmp.ne.s32.totalorder %s50, %s51
      %p62 = scmp.eq.s32.totalorder %s30, 0
      %p63 = por %p61, %p62
      %p64 = scmp.ne.s32.totalorder %s50, %s51
      %p65 = scmp.eq.s32.totalorder %s31, 3
      %p66 = por %p64, %p65
      %p68 = scmp.ne.s32.totalorder %s51, %s67
      %p69 = scmp.eq.s32.totalorder %s31, 0
      %p70 = por %p68, %p69
      %s72 = sadd.s32 %s71, 1
      %p75 = scmp.eq.s32.totalorder %s25, 3
      %p76 = scmp.ne.s32.totalorder %s71, %s73
      %p77 = scmp.eq.s32.totalorder %s25, 0
      %p78 = por %p76, %p77
      %p79 = scmp.ne.s32.totalorder %s71, %s73
      %p80 = scmp.eq.s32.totalorder %s30, 3
      %p81 = por %p79, %p80
      %p82 = scmp.ne.s32.totalorder %s73, %s74
      %p83 = scmp.eq.s32.totalorder %s30, 0
      %p84 = por %p82, %p83
      %p85 = scmp.ne.s32.totalorder %s73, %s74
      %p86 = scmp.eq.s32.totalorder %s31, 3
      %p87 = por %p85, %p86
      %p89 = scmp.ne.s32.totalorder %s74, %s88
      %p90 = scmp.eq.s32.totalorder %s31, 0
      %p91 = por %p89, %p90
      %s93 = sadd.s32 %s92, 1
      %p96 = scmp.eq.s32.totalorder %s25, 3
      %p97 = scmp.ne.s32.totalorder %s92, %s94
      %p98 = scmp.eq.s32.totalorder %s25, 0
      %p99 = por %p97, %p98
      %p100 = scmp.ne.s32.totalorder %s92, %s94
      %p101 = scmp.eq.s32.totalorder %s30, 3
      %p102 = por %p100, %p101
      %p103 = scmp.ne.s32.totalorder %s94, %s95
      %p104 = scmp.eq.s32.totalorder %s30, 0
      %p105 = por %p103, %p104
      %p106 = scmp.ne.s32.totalorder %s94, %s95
      %p107 = scmp.eq.s32.totalorder %s31, 3
      %p108 = por %p106, %p107
      %p110 = scmp.ne.s32.totalorder %s95, %s109
      %p111 = scmp.eq.s32.totalorder %s31, 0
      %p112 = por %p110, %p111
      %s114 = sadd.s32 %s113, 1
      %p117 = scmp.eq.s32.totalorder %s25, 3
      %p118 = scmp.ne.s32.totalorder %s113, %s115
      %p119 = scmp.eq.s32.totalorder %s25, 0
      %p120 = por %p118, %p119
      %p121 = scmp.ne.s32.totalorder %s113, %s115
      %p122 = scmp.eq.s32.totalorder %s30, 3
      %p123 = por %p121, %p122
      %p124 = scmp.ne.s32.totalorder %s115, %s116
      %p125 = scmp.eq.s32.totalorder %s30, 0
      %p126 = por %p124, %p125
      %p127 = scmp.ne.s32.totalorder %s115, %s116
      %p128 = scmp.eq.s32.totalorder %s31, 3
      %p129 = por %p127, %p128
      %p131 = scmp.ne.s32.totalorder %s116, %s130
      %p132 = scmp.eq.s32.totalorder %s31, 0
      %p133 = por %p131, %p132
      %s135 = sadd.s32 %s134, 1
      %p138 = scmp.eq.s32.totalorder %s25, 3
      %p139 = scmp.ne.s32.totalorder %s134, %s136
      %p140 = scmp.eq.s32.totalorder %s25, 0
      %p141 = por %p139, %p140
      %p142 = scmp.ne.s32.totalorder %s134, %s136
      %p143 = scmp.eq.s32.totalorder %s30, 3
      %p144 = por %p142, %p143
      %p145 = scmp.ne.s32.totalorder %s136, %s137
      %p146 = scmp.eq.s32.totalorder %s30, 0
      %p147 = por %p145, %p146
      %p148 = scmp.ne.s32.totalorder %s136, %s137
      %p149 = scmp.eq.s32.totalorder %s31, 3
      %p150 = por %p148, %p149
      %p152 = scmp.ne.s32.totalorder %s137, %s151
      %p153 = scmp.eq.s32.totalorder %s31, 0
      %p154 = por %p152, %p153
      %s156 = sadd.s32 %s155, 1
      %p159 = scmp.eq.s32.totalorder %s25, 3
      %p160 = scmp.ne.s32.totalorder %s155, %s157
      %p161 = scmp.eq.s32.totalorder %s25, 0
      %p162 = por %p160, %p161
      %p163 = scmp.ne.s32.totalorder %s155, %s157
      %p164 = scmp.eq.s32.totalorder %s30, 3
      %p165 = por %p163, %p164
      %p166 = scmp.ne.s32.totalorder %s157, %s158
      %p167 = scmp.eq.s32.totalorder %s30, 0
      %p168 = por %p166, %p167
      %p169 = scmp.ne.s32.totalorder %s157, %s158
      %p170 = scmp.eq.s32.totalorder %s31, 3
      %p171 = por %p169, %p170
      %p173 = scmp.ne.s32.totalorder %s158, %s172
      %p174 = scmp.eq.s32.totalorder %s31, 0
      %p175 = por %p173, %p174
      %s177 = sadd.s32 %s176, 1
      %p180 = scmp.eq.s32.totalorder %s25, 3
      %p181 = scmp.ne.s32.totalorder %s176, %s178
      %p182 = scmp.eq.s32.totalorder %s25, 0
      %p183 = por %p181, %p182
      %p184 = scmp.ne.s32.totalorder %s176, %s178
      %p185 = scmp.eq.s32.totalorder %s30, 3
      %p186 = por %p184, %p185
      %p187 = scmp.ne.s32.totalorder %s178, %s179
      %p188 = scmp.eq.s32.totalorder %s30, 0
      %p189 = por %p187, %p188
      %p190 = scmp.ne.s32.totalorder %s178, %s179
      %p191 = scmp.eq.s32.totalorder %s31, 3
      %p192 = por %p190, %p191
      %p194 = scmp.ne.s32.totalorder %s179, %s193
      %p195 = scmp.eq.s32.totalorder %s31, 0
      %p196 = por %p194, %p195
      %s198 = sadd.s32 %s197, 1
      %p201 = scmp.eq.s32.totalorder %s25, 3
      %p202 = scmp.ne.s32.totalorder %s197, %s199
      %p203 = scmp.eq.s32.totalorder %s25, 0
      %p204 = por %p202, %p203
      %p205 = scmp.ne.s32.totalorder %s197, %s199
      %p206 = scmp.eq.s32.totalorder %s30, 3
      %p207 = por %p205, %p206
      %p208 = scmp.ne.s32.totalorder %s199, %s200
      %p209 = scmp.eq.s32.totalorder %s30, 0
      %p210 = por %p208, %p209
      %p211 = scmp.ne.s32.totalorder %s199, %s200
      %p212 = scmp.eq.s32.totalorder %s31, 3
      %p213 = por %p211, %p212
      %p215 = scmp.ne.s32.totalorder %s200, %s214
      %p216 = scmp.eq.s32.totalorder %s31, 0
      %p217 = por %p215, %p216
      %s219 = sadd.s32 %s218, 1
      %p222 = scmp.eq.s32.totalorder %s25, 3
      %p223 = scmp.ne.s32.totalorder %s218, %s220
      %p224 = scmp.eq.s32.totalorder %s25, 0
      %p225 = por %p223, %p224
      %p226 = scmp.ne.s32.totalorder %s218, %s220
      %p227 = scmp.eq.s32.totalorder %s30, 3
      %p228 = por %p226, %p227
      %p229 = scmp.ne.s32.totalorder %s220, %s221
      %p230 = scmp.eq.s32.totalorder %s30, 0
      %p231 = por %p229, %p230
      %p232 = scmp.ne.s32.totalorder %s220, %s221
      %p233 = scmp.eq.s32.totalorder %s31, 3
      %p234 = por %p232, %p233
      %p236 = scmp.ne.s32.totalorder %s221, %s235
      %p237 = scmp.eq.s32.totalorder %s31, 0
      %p238 = por %p236, %p237
      %s239 = ssub.s32 %s32, %s44
      %s240 = ssub.s32 %s33, %s40
      %s241 = sor.u32 %s239, %s240
      %p242 = scmp.eq.s32.totalorder %s241, 0
      %s244 = sadd.s32 %s243, 1
      %s245 = scalar_select %p242, %s243, %s244
      %p248 = pneg %p242
      %p249 = scmp.eq.s32.totalorder %s25, 3
      %p250 = por %p248, %p249
      %p251 = scmp.ne.s32.totalorder %s243, %s246
      %p252 = scmp.eq.s32.totalorder %s25, 0
      %p253 = por %p251, %p252
      %p254 = scmp.ne.s32.totalorder %s243, %s246
      %p255 = scmp.eq.s32.totalorder %s30, 3
      %p256 = por %p254, %p255
      %p257 = scmp.ne.s32.totalorder %s246, %s247
      %p258 = scmp.eq.s32.totalorder %s30, 0
      %p259 = por %p257, %p258
      %p260 = scmp.ne.s32.totalorder %s246, %s247
      %p261 = scmp.eq.s32.totalorder %s31, 3
      %p262 = por %p260, %p261
      %p264 = scmp.ne.s32.totalorder %s247, %s263
      %p265 = scmp.eq.s32.totalorder %s31, 0
      %p266 = por %p264, %p265
      %p267 = scmp.le.s32.totalorder 1, %s25
      %p268 = scmp.lt.s32.totalorder %s25, 5
      %p269 = pnand %p267, %p268
      %p270 = pneg %p269
      // Predicated region
      $region9: #{tpu_custom_call.1} parent=5 // pred_check
        _
      $region10: #{tpu_custom_call.1} parent=5 // pred_check_branch
        %272 = sbr.rel (%p269) target = $region12
      $region11: #{tpu_custom_call.1} parent=5 // pred_region
        %s273 = ssub.s32 %s25, 1
        // Predicated region
        $region13: #{tpu_custom_call.1} parent=11 // pred_check
          %p274 = pneg %p84
        $region14: #{tpu_custom_call.1} parent=11 // pred_check_branch
          %276 = sbr.rel (%p274) target = $region16
        $region15: #{tpu_custom_call.1} parent=11 // pred_region
          %s278 = ssub.s32 512, 512
          %279 = vsyncadd [#allocation8], %s278
          %s280 = sshll.u32 [#allocation7], 4
          %s281 = int_to_ptr.vmem [resolvable:$true] %s280
          %286 = dma.hbm_to_vmem [thread:$0]  %s1, 512, %s281, [#allocation8], 64, 64, 4
        $region16: #{tpu_custom_call.1} parent=11 // pred_fallthru
          _
        // Predicated region
        $region17: #{tpu_custom_call.1} parent=11 // pred_check
          %p287 = pneg %p105
        $region18: #{tpu_custom_call.1} parent=11 // pred_check_branch
          %289 = sbr.rel (%p287) target = $region20
        $region19: #{tpu_custom_call.1} parent=11 // pred_region
          %s291 = ssub.s32 16, 16
          %292 = vsyncadd [#allocation8], %s291
          %s294 = sshll.u32 [#allocation9], 4
          %s295 = int_to_ptr.vmem [resolvable:$true] %s294
          %297 = dma.hbm_to_vmem [thread:$0]  %s2, 16, %s295, [#allocation8]
        $region20: #{tpu_custom_call.1} parent=11 // pred_fallthru
          _
        // Predicated region
        $region21: #{tpu_custom_call.1} parent=11 // pred_check
          %p298 = pneg %p126
        $region22: #{tpu_custom_call.1} parent=11 // pred_check_branch
          %300 = sbr.rel (%p298) target = $region24
        $region23: #{tpu_custom_call.1} parent=11 // pred_region
          %s302 = ssub.s32 64, 64
          %303 = vsyncadd [#allocation11], %s302
          %s305 = sshll.u32 [#allocation10], 4
          %s306 = int_to_ptr.vmem [resolvable:$true] %s305
          %308 = dma.hbm_to_vmem [thread:$0]  %s3, 64, %s306, [#allocation11]
        $region24: #{tpu_custom_call.1} parent=11 // pred_fallthru
          _
        // Predicated region
        $region25: #{tpu_custom_call.1} parent=11 // pred_check
          %p309 = pneg %p147
        $region26: #{tpu_custom_call.1} parent=11 // pred_check_branch
          %311 = sbr.rel (%p309) target = $region28
        $region27: #{tpu_custom_call.1} parent=11 // pred_region
          %s313 = ssub.s32 128, 128
          %314 = vsyncadd [#allocation11], %s313
          %s316 = sshll.u32 [#allocation12], 4
          %s317 = int_to_ptr.vmem [resolvable:$true] %s316
          %319 = dma.hbm_to_vmem [thread:$0]  %s4, 128, %s317, [#allocation11]
        $region28: #{tpu_custom_call.1} parent=11 // pred_fallthru
          _
        // Predicated region
        $region29: #{tpu_custom_call.1} parent=11 // pred_check
          %p320 = pneg %p168
        $region30: #{tpu_custom_call.1} parent=11 // pred_check_branch
          %322 = sbr.rel (%p320) target = $region32
        $region31: #{tpu_custom_call.1} parent=11 // pred_region
          %s324 = ssub.s32 512, 512
          %325 = vsyncadd [#allocation14], %s324
          %s326 = sshll.u32 [#allocation13], 4
          %s327 = int_to_ptr.vmem [resolvable:$true] %s326
          %332 = dma.hbm_to_vmem [thread:$0]  %s5, 512, %s327, [#allocation14], 64, 64, 4
        $region32: #{tpu_custom_call.1} parent=11 // pred_fallthru
          _
        // Predicated region
        $region33: #{tpu_custom_call.1} parent=11 // pred_check
          %p333 = pneg %p189
        $region34: #{tpu_custom_call.1} parent=11 // pred_check_branch
          %335 = sbr.rel (%p333) target = $region36
        $region35: #{tpu_custom_call.1} parent=11 // pred_region
          %s337 = ssub.s32 16, 16
          %338 = vsyncadd [#allocation14], %s337
          %s340 = sshll.u32 [#allocation15], 4
          %s341 = int_to_ptr.vmem [resolvable:$true] %s340
          %343 = dma.hbm_to_vmem [thread:$0]  %s6, 16, %s341, [#allocation14]
        $region36: #{tpu_custom_call.1} parent=11 // pred_fallthru
          _
        // Predicated region
        $region37: #{tpu_custom_call.1} parent=11 // pred_check
          %p344 = pneg %p210
        $region38: #{tpu_custom_call.1} parent=11 // pred_check_branch
          %346 = sbr.rel (%p344) target = $region40
        $region39: #{tpu_custom_call.1} parent=11 // pred_region
          %s348 = ssub.s32 256, 256
          %349 = vsyncadd [#allocation17], %s348
          %s350 = sshll.u32 [#allocation16], 4
          %s351 = int_to_ptr.vmem [resolvable:$true] %s350
          %356 = dma.hbm_to_vmem [thread:$0]  %s7, 256, %s351, [#allocation17], 64, 64, 4
        $region40: #{tpu_custom_call.1} parent=11 // pred_fallthru
          _
        // Predicated region
        $region41: #{tpu_custom_call.1} parent=11 // pred_check
          %p357 = pneg %p231
        $region42: #{tpu_custom_call.1} parent=11 // pred_check_branch
          %359 = sbr.rel (%p357) target = $region44
        $region43: #{tpu_custom_call.1} parent=11 // pred_region
          %s361 = ssub.s32 16, 16
          %362 = vsyncadd [#allocation17], %s361
          %s364 = sshll.u32 [#allocation18], 4
          %s365 = int_to_ptr.vmem [resolvable:$true] %s364
          %367 = dma.hbm_to_vmem [thread:$0]  %s8, 16, %s365, [#allocation17]
        $region44: #{tpu_custom_call.1} parent=11 // pred_fallthru
          _
      $region12: #{tpu_custom_call.1} parent=5 // pred_fallthru
        _
      %p368 = scmp.lt.s32.totalorder %s25, 4
      // Predicated region
      $region45: #{tpu_custom_call.1} parent=5 // pred_check
        %p369 = pneg %p368
      $region46: #{tpu_custom_call.1} parent=5 // pred_check_branch
        %371 = sbr.rel (%p369) target = $region48
      $region47: #{tpu_custom_call.1} parent=5 // pred_region
        // Predicated region
        $region49: #{tpu_custom_call.1} parent=47 // pred_check
          %p372 = pneg %p57
        $region50: #{tpu_custom_call.1} parent=47 // pred_check_branch
          %374 = sbr.rel (%p372) target = $region52
        $region51: #{tpu_custom_call.1} parent=47 // pred_region
          %s375 = sand.u32 %s47, 1
          %s376 = scalar_lea.sflag [#allocation5], %s375
          %s377 = sand.u32 %s47, 1
          %s378 = smul.addr %s377, 256
          %s379 = scalar_lea.vmem [#allocation4], %s378
          %s381 = ssub.s32 4096, 4096
          %382 = vsyncadd %s376, %s381
          %s383 = smul.addr %s32, 32
          %s384 = smul.addr %s383, 128
          %s385 = scalar_lea.hbm %s0, %s384
          %s386 = sshll.u32 %s379, 4
          %s387 = int_to_ptr.vmem [resolvable:$true] %s386
          %392 = dma.hbm_to_vmem [thread:$0]  %s385, 4096, %s387, %s376, 128, 128, 8
        $region52: #{tpu_custom_call.1} parent=47 // pred_fallthru
          _
      $region48: #{tpu_custom_call.1} parent=5 // pred_fallthru
        _
      %p393 = scmp.le.s32.totalorder 1, %s25
      %p394 = scmp.lt.s32.totalorder %s25, 5
      %p395 = pnand %p393, %p394
      %p396 = pneg %p395
      // Predicated region
      $region53: #{tpu_custom_call.1} parent=5 // pred_check
        _
      $region54: #{tpu_custom_call.1} parent=5 // pred_check_branch
        %398 = sbr.rel (%p395) target = $region56
      $region55: #{tpu_custom_call.1} parent=5 // pred_region
        %s399 = ssub.s32 %s25, 1
        %s400 = sand.u32 %s50, 1
        %s401 = scalar_lea.sflag [#allocation5], %s400
        %s402 = sand.u32 %s50, 1
        %s403 = smul.addr %s402, 256
        %s404 = scalar_lea.vmem [#allocation4], %s403
        // Predicated region
        $region57: #{tpu_custom_call.1} parent=55 // pred_check
          %p405 = pneg %p63
        $region58: #{tpu_custom_call.1} parent=55 // pred_check_branch
          %407 = sbr.rel (%p405) target = $region60
        $region59: #{tpu_custom_call.1} parent=55 // pred_region
          %408 = dma.done %s401, 4096
        $region60: #{tpu_custom_call.1} parent=55 // pred_fallthru
          _
        // Predicated region
        $region61: #{tpu_custom_call.1} parent=55 // pred_check
          %p409 = pneg %p84
        $region62: #{tpu_custom_call.1} parent=55 // pred_check_branch
          %411 = sbr.rel (%p409) target = $region64
        $region63: #{tpu_custom_call.1} parent=55 // pred_region
          %412 = dma.done [#allocation8], 512
        $region64: #{tpu_custom_call.1} parent=55 // pred_fallthru
          _
        // Predicated region
        $region65: #{tpu_custom_call.1} parent=55 // pred_check
          %p413 = pneg %p105
        $region66: #{tpu_custom_call.1} parent=55 // pred_check_branch
          %415 = sbr.rel (%p413) target = $region68
        $region67: #{tpu_custom_call.1} parent=55 // pred_region
          %416 = dma.done [#allocation8], 16
        $region68: #{tpu_custom_call.1} parent=55 // pred_fallthru
          _
        // Predicated region
        $region69: #{tpu_custom_call.1} parent=55 // pred_check
          %p417 = pneg %p126
        $region70: #{tpu_custom_call.1} parent=55 // pred_check_branch
          %419 = sbr.rel (%p417) target = $region72
        $region71: #{tpu_custom_call.1} parent=55 // pred_region
          %420 = dma.done [#allocation11], 64
        $region72: #{tpu_custom_call.1} parent=55 // pred_fallthru
          _
        // Predicated region
        $region73: #{tpu_custom_call.1} parent=55 // pred_check
          %p421 = pneg %p147
        $region74: #{tpu_custom_call.1} parent=55 // pred_check_branch
          %423 = sbr.rel (%p421) target = $region76
        $region75: #{tpu_custom_call.1} parent=55 // pred_region
          %424 = dma.done [#allocation11], 128
        $region76: #{tpu_custom_call.1} parent=55 // pred_fallthru
          _
        // Predicated region
        $region77: #{tpu_custom_call.1} parent=55 // pred_check
          %p425 = pneg %p168
        $region78: #{tpu_custom_call.1} parent=55 // pred_check_branch
          %427 = sbr.rel (%p425) target = $region80
        $region79: #{tpu_custom_call.1} parent=55 // pred_region
          %428 = dma.done [#allocation14], 512
        $region80: #{tpu_custom_call.1} parent=55 // pred_fallthru
          _
        // Predicated region
        $region81: #{tpu_custom_call.1} parent=55 // pred_check
          %p429 = pneg %p189
        $region82: #{tpu_custom_call.1} parent=55 // pred_check_branch
          %431 = sbr.rel (%p429) target = $region84
        $region83: #{tpu_custom_call.1} parent=55 // pred_region
          %432 = dma.done [#allocation14], 16
        $region84: #{tpu_custom_call.1} parent=55 // pred_fallthru
          _
        // Predicated region
        $region85: #{tpu_custom_call.1} parent=55 // pred_check
          %p433 = pneg %p210
        $region86: #{tpu_custom_call.1} parent=55 // pred_check_branch
          %435 = sbr.rel (%p433) target = $region88
        $region87: #{tpu_custom_call.1} parent=55 // pred_region
          %436 = dma.done [#allocation17], 256
        $region88: #{tpu_custom_call.1} parent=55 // pred_fallthru
          _
        // Predicated region
        $region89: #{tpu_custom_call.1} parent=55 // pred_check
          %p437 = pneg %p231
        $region90: #{tpu_custom_call.1} parent=55 // pred_check_branch
          %439 = sbr.rel (%p437) target = $region92
        $region91: #{tpu_custom_call.1} parent=55 // pred_region
          %440 = dma.done [#allocation17], 16
        $region92: #{tpu_custom_call.1} parent=55 // pred_fallthru
          _
        %s441 = sand.u32 %s50, 1
        %s442 = scalar_lea.sflag [#allocation5], %s441
        %s443 = sand.u32 %s50, 1
        %s444 = smul.addr %s443, 256
        %s445 = scalar_lea.vmem [#allocation4], %s444
        %p446 = pneg %p63
        %p447 = pneg %p60
        %p448 = pneg %p84
        %p449 = pneg %p81
        %p450 = pneg %p105
        %p451 = pneg %p102
        %p452 = pneg %p126
        %p453 = pneg %p123
        %p454 = pneg %p147
        %p455 = pneg %p144
        %p456 = pneg %p168
        %p457 = pneg %p165
        %p458 = pneg %p189
        %p459 = pneg %p186
        %p460 = pneg %p210
        %p461 = pneg %p207
        %p462 = pneg %p231
        %p463 = pneg %p228
        %p464 = pneg %p259
        %p465 = pneg %p256
        %s466 = sand.u32 %s246, 1
        %s467 = scalar_lea.sflag [#allocation6], %s466
        %s468 = sand.u32 %s246, 1
        %s469 = smul.addr %s468, 128
        %s470 = scalar_lea.vmem [#allocation19], %s469
        %s471 = smul.u32 16, %s35
        %p473 = scmp.eq.s32.totalorder %s35, 0
        // Predicated region
        $region93: #{tpu_custom_call.1} parent=55 // pred_check
          %p474 = pneg %p473
        $region94: #{tpu_custom_call.1} parent=55 // pred_check_branch
          %476 = sbr.rel (%p474) target = $region96
        $region95: #{tpu_custom_call.1} parent=55 // pred_region
          %v477 = vld [vmem:[%s404] sm:$0xff]
          %v478 = vld [vmem:[%s404 + $0x8] sm:$0xff]
          %v479 = vld [vmem:[%s404 + $0x10] sm:$0xff]
          %v480 = vld [vmem:[%s404 + $0x18] sm:$0xff]
          %v481 = vld [vmem:[%s404 + $0x20] sm:$0xff]
          %v482 = vld [vmem:[%s404 + $0x28] sm:$0xff]
          %v483 = vld [vmem:[%s404 + $0x30] sm:$0xff]
          %v484 = vld [vmem:[%s404 + $0x38] sm:$0xff]
          %v485 = vpack.c.bf16 %v478, %v477
          %v486 = vpack.c.bf16 %v480, %v479
          %v487 = vpack.c.bf16 %v482, %v481
          %v488 = vpack.c.bf16 %v484, %v483
          %v489 = vld [vmem:[#allocation10] sm:$0xf]
          %vm490 = vcmask 523264
          %v492 = vsel %vm490, %v489, 0
          %v495 = vsel %vm490, %v485, 0
          %v498 = vsel %vm490, %v486, 0
          %v501 = vsel %vm490, %v487, 0
          %v504 = vsel %vm490, %v488, 0
          %506 = vmatprep.subr.bf16.mxu0 0
          %507 = vmatpush1.bf16.xpose.msra.mxu0 %v495
          %508 = vmatprep.subr.bf16.mxu0 0
          %509 = vmatpush1.bf16.xpose.msra.mxu0 %v498
          %510 = vmatprep.subr.bf16.mxu0 0
          %511 = vmatpush1.bf16.xpose.msra.mxu0 %v501
          %512 = vmatprep.subr.bf16.mxu0 0
          %513 = vmatpush1.bf16.xpose.msra.mxu0 %v504
          %514 = vmatprep.subr.bf16.mxu0 0
          %515 = vmatpush1.bf16.xpose.msra.mxu0 0
          %516 = vmatprep.subr.bf16.mxu0 0
          %517 = vmatpush1.bf16.xpose.msra.mxu0 0
          %518 = vmatprep.subr.bf16.mxu0 0
          %519 = vmatpush1.bf16.xpose.msra.mxu0 0
          %520 = vmatprep.subr.bf16.mxu0 0
          %521 = vmatpush1.bf16.xpose.msra.mxu0 0
          %522 = vmatprep.subr.bf16.mxu0 0
          %523 = vmatpush1.bf16.xpose.msra.mxu0 0
          %524 = vmatprep.subr.bf16.mxu0 0
          %525 = vmatpush1.bf16.xpose.msra.mxu0 0
          %526 = vmatprep.subr.bf16.mxu0 0
          %527 = vmatpush1.bf16.xpose.msra.mxu0 0
          %528 = vmatprep.subr.bf16.mxu0 0
          %529 = vmatpush1.bf16.xpose.msra.mxu0 0
          %530 = vmatprep.subr.bf16.mxu0 0
          %531 = vmatpush1.bf16.xpose.msra.mxu0 0
          %532 = vmatprep.subr.bf16.mxu0 0
          %533 = vmatpush1.bf16.xpose.msra.mxu0 0
          %534 = vmatprep.subr.bf16.mxu0 0
          %535 = vmatpush1.bf16.xpose.msra.mxu0 0
          %536 = vmatprep.subr.bf16.mxu0 0
          %537 = vmatpush1.bf16.xpose.msra.mxu0 0
          %538 = vmatprep.mubr.bf16.mxu0 0
          %539 = vmatmul.mubr.bf16.gmra.mrb[0].mxu0 %v492
          %v540 = vpop.f32.mrb[0].mxu0
          %v541 = vadd.f32 0.0, %v540
          %v542 = vpop.f32.mrb[0].mxu0
          %v543 = vpop.f32.mrb[0].mxu0
          %v544 = vpop.f32.mrb[0].mxu0
          %545 = vdwg.mxu0
          %v546 = vld [vmem:[#allocation13] sm:$0xf]
          %v547 = vld [vmem:[#allocation13 + $0x4] sm:$0xf]
          %v548 = vld [vmem:[#allocation13 + $0x8] sm:$0xf]
          %v549 = vld [vmem:[#allocation13 + $0xc] sm:$0xf]
          %v550 = vld [vmem:[#allocation13 + $0x10] sm:$0xf]
          %v551 = vld [vmem:[#allocation13 + $0x14] sm:$0xf]
          %v552 = vld [vmem:[#allocation13 + $0x18] sm:$0xf]
          %v553 = vld [vmem:[#allocation13 + $0x1c] sm:$0xf]
          %v562 = vunpack.c.l.b16 %v546
          %v563 = vunpack.c.l.b16 %v547
          %v564 = vunpack.c.l.b16 %v548
          %v565 = vunpack.c.l.b16 %v549
          %v566 = vunpack.c.l.b16 %v550
          %v567 = vunpack.c.l.b16 %v551
          %v568 = vunpack.c.l.b16 %v552
          %v569 = vunpack.c.l.b16 %v553
          %v570 = vpack.c.b16 %v563, %v562
          %v571 = vpack.c.b16 %v565, %v564
          %v572 = vpack.c.b16 %v567, %v566
          %v573 = vpack.c.b16 %v569, %v568
          %578 = vmatprep.subr.bf16.mxu0 0
          %579 = vmatpush1.bf16.msra.mxu0 %v570
          %580 = vmatprep.subr.bf16.mxu0 0
          %581 = vmatpush1.bf16.msra.mxu0 %v571
          %582 = vmatprep.subr.bf16.mxu0 0
          %583 = vmatpush1.bf16.msra.mxu0 %v572
          %584 = vmatprep.subr.bf16.mxu0 0
          %585 = vmatpush1.bf16.msra.mxu0 %v573
          %586 = vmatprep.subr.bf16.mxu0 0
          %587 = vmatpush1.bf16.msra.mxu0 0
          %588 = vmatprep.subr.bf16.mxu0 0
          %589 = vmatpush1.bf16.msra.mxu0 0
          %590 = vmatprep.subr.bf16.mxu0 0
          %591 = vmatpush1.bf16.msra.mxu0 0
          %592 = vmatprep.subr.bf16.mxu0 0
          %593 = vmatpush1.bf16.msra.mxu0 0
          %594 = vmatprep.subr.bf16.mxu0 0
          %595 = vmatpush1.bf16.msra.mxu0 0
          %596 = vmatprep.subr.bf16.mxu0 0
          %597 = vmatpush1.bf16.msra.mxu0 0
          %598 = vmatprep.subr.bf16.mxu0 0
          %599 = vmatpush1.bf16.msra.mxu0 0
          %600 = vmatprep.subr.bf16.mxu0 0
          %601 = vmatpush1.bf16.msra.mxu0 0
          %602 = vmatprep.subr.bf16.mxu0 0
          %603 = vmatpush1.bf16.msra.mxu0 0
          %604 = vmatprep.subr.bf16.mxu0 0
          %605 = vmatpush1.bf16.msra.mxu0 0
          %606 = vmatprep.subr.bf16.mxu0 0
          %607 = vmatpush1.bf16.msra.mxu0 0
          %608 = vmatprep.subr.bf16.mxu0 0
          %609 = vmatpush1.bf16.msra.mxu0 0
          %610 = vmatprep.mubr.bf16.mxu0 0
          %611 = vmatmul.mubr.bf16.gmra.mrb[0].mxu0 %v495
          %v612 = vpop.f32.mrb[0].mxu0
          %v613 = vadd.f32 0.0, %v612
          %v614 = vpop.f32.mrb[0].mxu0
          %v615 = vpop.f32.mrb[0].mxu0
          %v616 = vadd.f32 0.0, %v615
          %v617 = vpop.f32.mrb[0].mxu0
          %618 = vmatprep.mubr.bf16.mxu0 0
          %619 = vmatmul.mubr.bf16.gmra.mrb[0].mxu0 %v498
          %v620 = vpop.f32.mrb[0].mxu0
          %v621 = vadd.f32 0.0, %v620
          %v622 = vpop.f32.mrb[0].mxu0
          %v623 = vpop.f32.mrb[0].mxu0
          %v624 = vadd.f32 0.0, %v623
          %v625 = vpop.f32.mrb[0].mxu0
          %626 = vmatprep.mubr.bf16.mxu0 0
          %627 = vmatmul.mubr.bf16.gmra.mrb[0].mxu0 %v501
          %v628 = vpop.f32.mrb[0].mxu0
          %v629 = vadd.f32 0.0, %v628
          %v630 = vpop.f32.mrb[0].mxu0
          %v631 = vpop.f32.mrb[0].mxu0
          %v632 = vadd.f32 0.0, %v631
          %v633 = vpop.f32.mrb[0].mxu0
          %634 = vmatprep.mubr.bf16.mxu0 0
          %635 = vmatmul.mubr.bf16.gmra.mrb[0].mxu0 %v504
          %v636 = vpop.f32.mrb[0].mxu0
          %v637 = vadd.f32 0.0, %v636
          %v638 = vpop.f32.mrb[0].mxu0
          %v639 = vpop.f32.mrb[0].mxu0
          %v640 = vadd.f32 0.0, %v639
          %v641 = vpop.f32.mrb[0].mxu0
          %642 = vdwg.mxu0
          %v643 = vld [vmem:[%s404 + $0x40] sm:$0xff]
          %v644 = vld [vmem:[%s404 + $0x48] sm:$0xff]
          %v645 = vld [vmem:[%s404 + $0x50] sm:$0xff]
          %v646 = vld [vmem:[%s404 + $0x58] sm:$0xff]
          %v647 = vld [vmem:[%s404 + $0x60] sm:$0xff]
          %v648 = vld [vmem:[%s404 + $0x68] sm:$0xff]
          %v649 = vld [vmem:[%s404 + $0x70] sm:$0xff]
          %v650 = vld [vmem:[%s404 + $0x78] sm:$0xff]
          %v651 = vpack.c.bf16 %v644, %v643
          %v652 = vpack.c.bf16 %v646, %v645
          %v653 = vpack.c.bf16 %v648, %v647
          %v654 = vpack.c.bf16 %v650, %v649
          %v656 = vsel %vm490, %v651, 0
          %v659 = vsel %vm490, %v652, 0
          %v662 = vsel %vm490, %v653, 0
          %v665 = vsel %vm490, %v654, 0
          %667 = vmatprep.subr.bf16.mxu0 0
          %668 = vmatpush1.bf16.xpose.msra.mxu0 %v656
          %669 = vmatprep.subr.bf16.mxu0 0
          %670 = vmatpush1.bf16.xpose.msra.mxu0 %v659
          %671 = vmatprep.subr.bf16.mxu0 0
          %672 = vmatpush1.bf16.xpose.msra.mxu0 %v662
          %673 = vmatprep.subr.bf16.mxu0 0
          %674 = vmatpush1.bf16.xpose.msra.mxu0 %v665
          %675 = vmatprep.subr.bf16.mxu0 0
          %676 = vmatpush1.bf16.xpose.msra.mxu0 0
          %677 = vmatprep.subr.bf16.mxu0 0
          %678 = vmatpush1.bf16.xpose.msra.mxu0 0
          %679 = vmatprep.subr.bf16.mxu0 0
          %680 = vmatpush1.bf16.xpose.msra.mxu0 0
          %681 = vmatprep.subr.bf16.mxu0 0
          %682 = vmatpush1.bf16.xpose.msra.mxu0 0
          %683 = vmatprep.subr.bf16.mxu0 0
          %684 = vmatpush1.bf16.xpose.msra.mxu0 0
          %685 = vmatprep.subr.bf16.mxu0 0
          %686 = vmatpush1.bf16.xpose.msra.mxu0 0
          %687 = vmatprep.subr.bf16.mxu0 0
          %688 = vmatpush1.bf16.xpose.msra.mxu0 0
          %689 = vmatprep.subr.bf16.mxu0 0
          %690 = vmatpush1.bf16.xpose.msra.mxu0 0
          %691 = vmatprep.subr.bf16.mxu0 0
          %692 = vmatpush1.bf16.xpose.msra.mxu0 0
          %693 = vmatprep.subr.bf16.mxu0 0
          %694 = vmatpush1.bf16.xpose.msra.mxu0 0
          %695 = vmatprep.subr.bf16.mxu0 0
          %696 = vmatpush1.bf16.xpose.msra.mxu0 0
          %697 = vmatprep.subr.bf16.mxu0 0
          %698 = vmatpush1.bf16.xpose.msra.mxu0 0
          %699 = vmatprep.mubr.bf16.mxu0 0
          %700 = vmatmul.mubr.bf16.gmra.mrb[0].mxu0 %v492
          %v701 = vpop.f32.mrb[0].mxu0
          %v702 = vadd.f32 0.0, %v701
          %v703 = vpop.f32.mrb[0].mxu0
          %v704 = vpop.f32.mrb[0].mxu0
          %v705 = vpop.f32.mrb[0].mxu0
          %706 = vdwg.mxu0
          %707 = vmatprep.subr.bf16.mxu0 0
          %708 = vmatpush1.bf16.msra.mxu0 %v570
          %709 = vmatprep.subr.bf16.mxu0 0
          %710 = vmatpush1.bf16.msra.mxu0 %v571
          %711 = vmatprep.subr.bf16.mxu0 0
          %712 = vmatpush1.bf16.msra.mxu0 %v572
          %713 = vmatprep.subr.bf16.mxu0 0
          %714 = vmatpush1.bf16.msra.mxu0 %v573
          %715 = vmatprep.subr.bf16.mxu0 0
          %716 = vmatpush1.bf16.msra.mxu0 0
          %717 = vmatprep.subr.bf16.mxu0 0
          %718 = vmatpush1.bf16.msra.mxu0 0
          %719 = vmatprep.subr.bf16.mxu0 0
          %720 = vmatpush1.bf16.msra.mxu0 0
          %721 = vmatprep.subr.bf16.mxu0 0
          %722 = vmatpush1.bf16.msra.mxu0 0
          %723 = vmatprep.subr.bf16.mxu0 0
          %724 = vmatpush1.bf16.msra.mxu0 0
          %725 = vmatprep.subr.bf16.mxu0 0
          %726 = vmatpush1.bf16.msra.mxu0 0
          %727 = vmatprep.subr.bf16.mxu0 0
          %728 = vmatpush1.bf16.msra.mxu0 0
          %729 = vmatprep.subr.bf16.mxu0 0
          %730 = vmatpush1.bf16.msra.mxu0 0
          %731 = vmatprep.subr.bf16.mxu0 0
          %732 = vmatpush1.bf16.msra.mxu0 0
          %733 = vmatprep.subr.bf16.mxu0 0
          %734 = vmatpush1.bf16.msra.mxu0 0
          %735 = vmatprep.subr.bf16.mxu0 0
          %736 = vmatpush1.bf16.msra.mxu0 0
          %737 = vmatprep.subr.bf16.mxu0 0
          %738 = vmatpush1.bf16.msra.mxu0 0
          %739 = vmatprep.mubr.bf16.mxu0 0
          %740 = vmatmul.mubr.bf16.gmra.mrb[0].mxu0 %v656
          %v741 = vpop.f32.mrb[0].mxu0
          %v742 = vadd.f32 0.0, %v741
          %v743 = vpop.f32.mrb[0].mxu0
          %v744 = vpop.f32.mrb[0].mxu0
          %v745 = vadd.f32 0.0, %v744
          %v746 = vpop.f32.mrb[0].mxu0
          %747 = vmatprep.mubr.bf16.mxu0 0
          %748 = vmatmul.mubr.bf16.gmra.mrb[0].mxu0 %v659
          %v749 = vpop.f32.mrb[0].mxu0
          %v750 = vadd.f32 0.0, %v749
          %v751 = vpop.f32.mrb[0].mxu0
          %v752 = vpop.f32.mrb[0].mxu0
          %v753 = vadd.f32 0.0, %v752
          %v754 = vpop.f32.mrb[0].mxu0
          %755 = vmatprep.mubr.bf16.mxu0 0
          %756 = vmatmul.mubr.bf16.gmra.mrb[0].mxu0 %v662
          %v757 = vpop.f32.mrb[0].mxu0
          %v758 = vadd.f32 0.0, %v757
          %v759 = vpop.f32.mrb[0].mxu0
          %v760 = vpop.f32.mrb[0].mxu0
          %v761 = vadd.f32 0.0, %v760
          %v762 = vpop.f32.mrb[0].mxu0
          %763 = vmatprep.mubr.bf16.mxu0 0
          %764 = vmatmul.mubr.bf16.gmra.mrb[0].mxu0 %v665
          %v765 = vpop.f32.mrb[0].mxu0
          %v766 = vadd.f32 0.0, %v765
          %v767 = vpop.f32.mrb[0].mxu0
          %v768 = vpop.f32.mrb[0].mxu0
          %v769 = vadd.f32 0.0, %v768
          %v770 = vpop.f32.mrb[0].mxu0
          %771 = vdwg.mxu0
          %v772 = vmax.f32 %v541, %v702
          %v773 = vmax.f32 %v613, %v742
          %v774 = vmax.f32 %v616, %v745
          %v775 = vmax.f32 %v621, %v750
          %v776 = vmax.f32 %v624, %v753
          %v777 = vmax.f32 %v629, %v758
          %v778 = vmax.f32 %v632, %v761
          %v779 = vmax.f32 %v637, %v766
          %v780 = vmax.f32 %v640, %v769
          %v781 = vld [vmem:[%s404 + $0x80] sm:$0xff]
          %v782 = vld [vmem:[%s404 + $0x88] sm:$0xff]
          %v783 = vld [vmem:[%s404 + $0x90] sm:$0xff]
          %v784 = vld [vmem:[%s404 + $0x98] sm:$0xff]
          %v785 = vld [vmem:[%s404 + $0xa0] sm:$0xff]
          %v786 = vld [vmem:[%s404 + $0xa8] sm:$0xff]
          %v787 = vld [vmem:[%s404 + $0xb0] sm:$0xff]
          %v788 = vld [vmem:[%s404 + $0xb8] sm:$0xff]
          %v789 = vpack.c.bf16 %v782, %v781
          %v790 = vpack.c.bf16 %v784, %v783
          %v791 = vpack.c.bf16 %v786, %v785
          %v792 = vpack.c.bf16 %v788, %v787
          %v794 = vsel %vm490, %v789, 0
          %v797 = vsel %vm490, %v790, 0
          %v800 = vsel %vm490, %v791, 0
          %v803 = vsel %vm490, %v792, 0
          %805 = vmatprep.subr.bf16.mxu0 0
          %806 = vmatpush1.bf16.xpose.msra.mxu0 %v794
          %807 = vmatprep.subr.bf16.mxu0 0
          %808 = vmatpush1.bf16.xpose.msra.mxu0 %v797
          %809 = vmatprep.subr.bf16.mxu0 0
          %810 = vmatpush1.bf16.xpose.msra.mxu0 %v800
          %811 = vmatprep.subr.bf16.mxu0 0
          %812 = vmatpush1.bf16.xpose.msra.mxu0 %v803
          %813 = vmatprep.subr.bf16.mxu0 0
          %814 = vmatpush1.bf16.xpose.msra.mxu0 0
          %815 = vmatprep.subr.bf16.mxu0 0
          %816 = vmatpush1.bf16.xpose.msra.mxu0 0
          %817 = vmatprep.subr.bf16.mxu0 0
          %818 = vmatpush1.bf16.xpose.msra.mxu0 0
          %819 = vmatprep.subr.bf16.mxu0 0
          %820 = vmatpush1.bf16.xpose.msra.mxu0 0
          %821 = vmatprep.subr.bf16.mxu0 0
          %822 = vmatpush1.bf16.xpose.msra.mxu0 0
          %823 = vmatprep.subr.bf16.mxu0 0
          %824 = vmatpush1.bf16.xpose.msra.mxu0 0
          %825 = vmatprep.subr.bf16.mxu0 0
          %826 = vmatpush1.bf16.xpose.msra.mxu0 0
          %827 = vmatprep.subr.bf16.mxu0 0
          %828 = vmatpush1.bf16.xpose.msra.mxu0 0
          %829 = vmatprep.subr.bf16.mxu0 0
          %830 = vmatpush1.bf16.xpose.msra.mxu0 0
          %831 = vmatprep.subr.bf16.mxu0 0
          %832 = vmatpush1.bf16.xpose.msra.mxu0 0
          %833 = vmatprep.subr.bf16.mxu0 0
          %834 = vmatpush1.bf16.xpose.msra.mxu0 0
          %835 = vmatprep.subr.bf16.mxu0 0
          %836 = vmatpush1.bf16.xpose.msra.mxu0 0
          %837 = vmatprep.mubr.bf16.mxu0 0
          %838 = vmatmul.mubr.bf16.gmra.mrb[0].mxu0 %v492
          %v839 = vpop.f32.mrb[0].mxu0
          %v840 = vadd.f32 0.0, %v839
          %v841 = vpop.f32.mrb[0].mxu0
          %v842 = vpop.f32.mrb[0].mxu0
          %v843 = vpop.f32.mrb[0].mxu0
          %844 = vdwg.mxu0
          %845 = vmatprep.subr.bf16.mxu0 0
          %846 = vmatpush1.bf16.msra.mxu0 %v570
          %847 = vmatprep.subr.bf16.mxu0 0
          %848 = vmatpush1.bf16.msra.mxu0 %v571
          %849 = vmatprep.subr.bf16.mxu0 0
          %850 = vmatpush1.bf16.msra.mxu0 %v572
          %851 = vmatprep.subr.bf16.mxu0 0
          %852 = vmatpush1.bf16.msra.mxu0 %v573
          %853 = vmatprep.subr.bf16.mxu0 0
          %854 = vmatpush1.bf16.msra.mxu0 0
          %855 = vmatprep.subr.bf16.mxu0 0
          %856 = vmatpush1.bf16.msra.mxu0 0
          %857 = vmatprep.subr.bf16.mxu0 0
          %858 = vmatpush1.bf16.msra.mxu0 0
          %859 = vmatprep.subr.bf16.mxu0 0
          %860 = vmatpush1.bf16.msra.mxu0 0
          %861 = vmatprep.subr.bf16.mxu0 0
          %862 = vmatpush1.bf16.msra.mxu0 0
          %863 = vmatprep.subr.bf16.mxu0 0
          %864 = vmatpush1.bf16.msra.mxu0 0
          %865 = vmatprep.subr.bf16.mxu0 0
          %866 = vmatpush1.bf16.msra.mxu0 0
          %867 = vmatprep.subr.bf16.mxu0 0
          %868 = vmatpush1.bf16.msra.mxu0 0
          %869 = vmatprep.subr.bf16.mxu0 0
          %870 = vmatpush1.bf16.msra.mxu0 0
          %871 = vmatprep.subr.bf16.mxu0 0
          %872 = vmatpush1.bf16.msra.mxu0 0
          %873 = vmatprep.subr.bf16.mxu0 0
          %874 = vmatpush1.bf16.msra.mxu0 0
          %875 = vmatprep.subr.bf16.mxu0 0
          %876 = vmatpush1.bf16.msra.mxu0 0
          %877 = vmatprep.mubr.bf16.mxu0 0
          %878 = vmatmul.mubr.bf16.gmra.mrb[0].mxu0 %v794
          %v879 = vpop.f32.mrb[0].mxu0
          %v880 = vadd.f32 0.0, %v879
          %v881 = vpop.f32.mrb[0].mxu0
          %v882 = vpop.f32.mrb[0].mxu0
          %v883 = vadd.f32 0.0, %v882
          %v884 = vpop.f32.mrb[0].mxu0
          %885 = vmatprep.mubr.bf16.mxu0 0
          %886 = vmatmul.mubr.bf16.gmra.mrb[0].mxu0 %v797
          %v887 = vpop.f32.mrb[0].mxu0
          %v888 = vadd.f32 0.0, %v887
          %v889 = vpop.f32.mrb[0].mxu0
          %v890 = vpop.f32.mrb[0].mxu0
          %v891 = vadd.f32 0.0, %v890
          %v892 = vpop.f32.mrb[0].mxu0
          %893 = vmatprep.mubr.bf16.mxu0 0
          %894 = vmatmul.mubr.bf16.gmra.mrb[0].mxu0 %v800
          %v895 = vpop.f32.mrb[0].mxu0
          %v896 = vadd.f32 0.0, %v895
          %v897 = vpop.f32.mrb[0].mxu0
          %v898 = vpop.f32.mrb[0].mxu0
          %v899 = vadd.f32 0.0, %v898
          %v900 = vpop.f32.mrb[0].mxu0
          %901 = vmatprep.mubr.bf16.mxu0 0
          %902 = vmatmul.mubr.bf16.gmra.mrb[0].mxu0 %v803
          %v903 = vpop.f32.mrb[0].mxu0
          %v904 = vadd.f32 0.0, %v903
          %v905 = vpop.f32.mrb[0].mxu0
          %v906 = vpop.f32.mrb[0].mxu0
          %v907 = vadd.f32 0.0, %v906
          %v908 = vpop.f32.mrb[0].mxu0
          %909 = vdwg.mxu0
          %v910 = vmax.f32 %v772, %v840
          %v911 = vmax.f32 %v773, %v880
          %v912 = vmax.f32 %v774, %v883
          %v913 = vmax.f32 %v775, %v888
          %v914 = vmax.f32 %v776, %v891
          %v915 = vmax.f32 %v777, %v896
          %v916 = vmax.f32 %v778, %v899
          %v917 = vmax.f32 %v779, %v904
          %v918 = vmax.f32 %v780, %v907
          %v919 = vld [vmem:[%s404 + $0xc0] sm:$0xff]
          %v920 = vld [vmem:[%s404 + $0xc8] sm:$0xff]
          %v921 = vld [vmem:[%s404 + $0xd0] sm:$0xff]
          %v922 = vld [vmem:[%s404 + $0xd8] sm:$0xff]
          %v923 = vld [vmem:[%s404 + $0xe0] sm:$0xff]
          %v924 = vld [vmem:[%s404 + $0xe8] sm:$0xff]
          %v925 = vld [vmem:[%s404 + $0xf0] sm:$0xff]
          %v926 = vld [vmem:[%s404 + $0xf8] sm:$0xff]
          %v927 = vpack.c.bf16 %v920, %v919
          %v928 = vpack.c.bf16 %v922, %v921
          %v929 = vpack.c.bf16 %v924, %v923
          %v930 = vpack.c.bf16 %v926, %v925
          %v932 = vsel %vm490, %v927, 0
          %v935 = vsel %vm490, %v928, 0
          %v938 = vsel %vm490, %v929, 0
          %v941 = vsel %vm490, %v930, 0
          %943 = vmatprep.subr.bf16.mxu0 0
          %944 = vmatpush1.bf16.xpose.msra.mxu0 %v932
          %945 = vmatprep.subr.bf16.mxu0 0
          %946 = vmatpush1.bf16.xpose.msra.mxu0 %v935
          %947 = vmatprep.subr.bf16.mxu0 0
          %948 = vmatpush1.bf16.xpose.msra.mxu0 %v938
          %949 = vmatprep.subr.bf16.mxu0 0
          %950 = vmatpush1.bf16.xpose.msra.mxu0 %v941
          %951 = vmatprep.subr.bf16.mxu0 0
          %952 = vmatpush1.bf16.xpose.msra.mxu0 0
          %953 = vmatprep.subr.bf16.mxu0 0
          %954 = vmatpush1.bf16.xpose.msra.mxu0 0
          %955 = vmatprep.subr.bf16.mxu0 0
          %956 = vmatpush1.bf16.xpose.msra.mxu0 0
          %957 = vmatprep.subr.bf16.mxu0 0
          %958 = vmatpush1.bf16.xpose.msra.mxu0 0
          %959 = vmatprep.subr.bf16.mxu0 0
          %960 = vmatpush1.bf16.xpose.msra.mxu0 0
          %961 = vmatprep.subr.bf16.mxu0 0
          %962 = vmatpush1.bf16.xpose.msra.mxu0 0
          %963 = vmatprep.subr.bf16.mxu0 0
          %964 = vmatpush1.bf16.xpose.msra.mxu0 0
          %965 = vmatprep.subr.bf16.mxu0 0
          %966 = vmatpush1.bf16.xpose.msra.mxu0 0
          %967 = vmatprep.subr.bf16.mxu0 0
          %968 = vmatpush1.bf16.xpose.msra.mxu0 0
          %969 = vmatprep.subr.bf16.mxu0 0
          %970 = vmatpush1.bf16.xpose.msra.mxu0 0
          %971 = vmatprep.subr.bf16.mxu0 0
          %972 = vmatpush1.bf16.xpose.msra.mxu0 0
          %973 = vmatprep.subr.bf16.mxu0 0
          %974 = vmatpush1.bf16.xpose.msra.mxu0 0
          %975 = vmatprep.mubr.bf16.mxu0 0
          %976 = vmatmul.mubr.bf16.gmra.mrb[0].mxu0 %v492
          %v977 = vpop.f32.mrb[0].mxu0
          %v978 = vadd.f32 0.0, %v977
          %v979 = vpop.f32.mrb[0].mxu0
          %v980 = vpop.f32.mrb[0].mxu0
          %v981 = vpop.f32.mrb[0].mxu0
          %982 = vdwg.mxu0
          %983 = vmatprep.subr.bf16.mxu0 0
          %984 = vmatpush1.bf16.msra.mxu0 %v570
          %985 = vmatprep.subr.bf16.mxu0 0
          %986 = vmatpush1.bf16.msra.mxu0 %v571
          %987 = vmatprep.subr.bf16.mxu0 0
          %988 = vmatpush1.bf16.msra.mxu0 %v572
          %989 = vmatprep.subr.bf16.mxu0 0
          %990 = vmatpush1.bf16.msra.mxu0 %v573
          %991 = vmatprep.subr.bf16.mxu0 0
          %992 = vmatpush1.bf16.msra.mxu0 0
          %993 = vmatprep.subr.bf16.mxu0 0
          %994 = vmatpush1.bf16.msra.mxu0 0
          %995 = vmatprep.subr.bf16.mxu0 0
          %996 = vmatpush1.bf16.msra.mxu0 0
          %997 = vmatprep.subr.bf16.mxu0 0
          %998 = vmatpush1.bf16.msra.mxu0 0
          %999 = vmatprep.subr.bf16.mxu0 0
          %1000 = vmatpush1.bf16.msra.mxu0 0
          %1001 = vmatprep.subr.bf16.mxu0 0
          %1002 = vmatpush1.bf16.msra.mxu0 0
          %1003 = vmatprep.subr.bf16.mxu0 0
          %1004 = vmatpush1.bf16.msra.mxu0 0
          %1005 = vmatprep.subr.bf16.mxu0 0
          %1006 = vmatpush1.bf16.msra.mxu0 0
          %1007 = vmatprep.subr.bf16.mxu0 0
          %1008 = vmatpush1.bf16.msra.mxu0 0
          %1009 = vmatprep.subr.bf16.mxu0 0
          %1010 = vmatpush1.bf16.msra.mxu0 0
          %1011 = vmatprep.subr.bf16.mxu0 0
          %1012 = vmatpush1.bf16.msra.mxu0 0
          %1013 = vmatprep.subr.bf16.mxu0 0
          %1014 = vmatpush1.bf16.msra.mxu0 0
          %1015 = vmatprep.mubr.bf16.mxu0 0
          %1016 = vmatmul.mubr.bf16.gmra.mrb[0].mxu0 %v932
          %v1017 = vpop.f32.mrb[0].mxu0
          %v1018 = vadd.f32 0.0, %v1017
          %v1019 = vpop.f32.mrb[0].mxu0
          %v1020 = vpop.f32.mrb[0].mxu0
          %v1021 = vadd.f32 0.0, %v1020
          %v1022 = vpop.f32.mrb[0].mxu0
          %1023 = vmatprep.mubr.bf16.mxu0 0
          %1024 = vmatmul.mubr.bf16.gmra.mrb[0].mxu0 %v935
          %v1025 = vpop.f32.mrb[0].mxu0
          %v1026 = vadd.f32 0.0, %v1025
          %v1027 = vpop.f32.mrb[0].mxu0
          %v1028 = vpop.f32.mrb[0].mxu0
          %v1029 = vadd.f32 0.0, %v1028
          %v1030 = vpop.f32.mrb[0].mxu0
          %1031 = vmatprep.mubr.bf16.mxu0 0
          %1032 = vmatmul.mubr.bf16.gmra.mrb[0].mxu0 %v938
          %v1033 = vpop.f32.mrb[0].mxu0
          %v1034 = vadd.f32 0.0, %v1033
          %v1035 = vpop.f32.mrb[0].mxu0
          %v1036 = vpop.f32.mrb[0].mxu0
          %v1037 = vadd.f32 0.0, %v1036
          %v1038 = vpop.f32.mrb[0].mxu0
          %1039 = vmatprep.mubr.bf16.mxu0 0
          %1040 = vmatmul.mubr.bf16.gmra.mrb[0].mxu0 %v941
          %v1041 = vpop.f32.mrb[0].mxu0
          %v1042 = vadd.f32 0.0, %v1041
          %v1043 = vpop.f32.mrb[0].mxu0
          %v1044 = vpop.f32.mrb[0].mxu0
          %v1045 = vadd.f32 0.0, %v1044
          %v1046 = vpop.f32.mrb[0].mxu0
          %1047 = vdwg.mxu0
          %v1048 = vmax.f32 %v910, %v978
          %v1049 = vmax.f32 %v911, %v1018
          %v1050 = vmax.f32 %v912, %v1021
          %v1051 = vmax.f32 %v913, %v1026
          %v1052 = vmax.f32 %v914, %v1029
          %v1053 = vmax.f32 %v915, %v1034
          %v1054 = vmax.f32 %v916, %v1037
          %v1055 = vmax.f32 %v917, %v1042
          %v1056 = vmax.f32 %v918, %v1045
          %v1057 = vld [vmem:[#allocation12] sm:$0xff]
          %1059 = vset.pattern.permute.xlu0 0
          %1060 = vperm.xlu0 %1059, %v1057
          %v1061 = vpop.permute.xlu0 %1060
          %v1063 = vadd.f32 %v1048, %v1061
          %v1064 = vpack.c.bf16 %v1063, %v1063
          %vm1065 = vcmask 519168
          %1066 = vst.msk [vmem:[#allocation2] sm:$0xf] %vm1065, %v1064
          %v1067 = vld [vmem:[#allocation15] sm:$0x1]
          %v1069 = vlaneseq
          %v1070 = vshrl.u32 %v1069, 7
          %v1071 = vsub.s32 0, %v1070
          %v1072 = vrot.slane %v1067, %v1071
          %v1074 = vadd.f32 %v1049, %v1072
          %v1075 = vadd.f32 %v1050, %v1072
          %v1076 = vadd.f32 %v1051, %v1072
          %v1077 = vadd.f32 %v1052, %v1072
          %v1078 = vadd.f32 %v1053, %v1072
          %v1079 = vadd.f32 %v1054, %v1072
          %v1080 = vadd.f32 %v1055, %v1072
          %v1081 = vadd.f32 %v1056, %v1072
          %v1082 = vpack.c.bf16 %v1075, %v1074
          %v1083 = vpack.c.bf16 %v1077, %v1076
          %v1084 = vpack.c.bf16 %v1079, %v1078
          %v1085 = vpack.c.bf16 %v1081, %v1080
          %vm1086 = vcmask 261120
          %1087 = vst.msk [vmem:[#allocation3] sm:$0xff] %vm1086, %v1082
          %1088 = vst.msk [vmem:[#allocation3 + $0x8] sm:$0xff] %vm1086, %v1083
          %1089 = vst.msk [vmem:[#allocation3 + $0x10] sm:$0xff] %vm1086, %v1084
          %1090 = vst.msk [vmem:[#allocation3 + $0x18] sm:$0xff] %vm1086, %v1085
        $region96: #{tpu_custom_call.1} parent=55 // pred_fallthru
          _
        %s1091 = smul.u32 %s35, 128
        %s1092 = scalar_lea.vmem %s404, %s1091 [#allocation4]
        %v1093 = vld [vmem:[%s1092] sm:$0xff]
        %v1094 = vld [vmem:[%s1092 + $0x8] sm:$0xff]
        %v1095 = vld [vmem:[%s1092 + $0x10] sm:$0xff]
        %v1096 = vld [vmem:[%s1092 + $0x18] sm:$0xff]
        %v1097 = vld [vmem:[%s1092 + $0x20] sm:$0xff]
        %v1098 = vld [vmem:[%s1092 + $0x28] sm:$0xff]
        %v1099 = vld [vmem:[%s1092 + $0x30] sm:$0xff]
        %v1100 = vld [vmem:[%s1092 + $0x38] sm:$0xff]
        %v1101 = vld [vmem:[%s1092 + $0x40] sm:$0xff]
        %v1102 = vld [vmem:[%s1092 + $0x48] sm:$0xff]
        %v1103 = vld [vmem:[%s1092 + $0x50] sm:$0xff]
        %v1104 = vld [vmem:[%s1092 + $0x58] sm:$0xff]
        %v1105 = vld [vmem:[%s1092 + $0x60] sm:$0xff]
        %v1106 = vld [vmem:[%s1092 + $0x68] sm:$0xff]
        %v1107 = vld [vmem:[%s1092 + $0x70] sm:$0xff]
        %v1108 = vld [vmem:[%s1092 + $0x78] sm:$0xff]
        %v1109 = vpack.c.bf16 %v1094, %v1093
        %v1110 = vpack.c.bf16 %v1096, %v1095
        %v1111 = vpack.c.bf16 %v1098, %v1097
        %v1112 = vpack.c.bf16 %v1100, %v1099
        %v1113 = vpack.c.bf16 %v1102, %v1101
        %v1114 = vpack.c.bf16 %v1104, %v1103
        %v1115 = vpack.c.bf16 %v1106, %v1105
        %v1116 = vpack.c.bf16 %v1108, %v1107
        %v1117 = vld [vmem:[#allocation7] sm:$0xf]
        %v1118 = vld [vmem:[#allocation7 + $0x4] sm:$0xf]
        %v1119 = vld [vmem:[#allocation7 + $0x8] sm:$0xf]
        %v1120 = vld [vmem:[#allocation7 + $0xc] sm:$0xf]
        %v1121 = vld [vmem:[#allocation7 + $0x10] sm:$0xf]
        %v1122 = vld [vmem:[#allocation7 + $0x14] sm:$0xf]
        %v1123 = vld [vmem:[#allocation7 + $0x18] sm:$0xf]
        %v1124 = vld [vmem:[#allocation7 + $0x1c] sm:$0xf]
        %v1125 = vld [vmem:[#allocation9] sm:$0x1]
        %v1127 = vlaneseq
        %v1128 = vshrl.u32 %v1127, 7
        %v1129 = vsub.s32 0, %v1128
        %v1130 = vrot.slane %v1125, %v1129
        %v1140 = vunpack.c.l.b16 %v1117
        %v1141 = vunpack.c.l.b16 %v1118
        %v1142 = vunpack.c.l.b16 %v1119
        %v1143 = vunpack.c.l.b16 %v1120
        %v1144 = vunpack.c.l.b16 %v1121
        %v1145 = vunpack.c.l.b16 %v1122
        %v1146 = vunpack.c.l.b16 %v1123
        %v1147 = vunpack.c.l.b16 %v1124
        %v1148 = vpack.c.b16 %v1141, %v1140
        %v1149 = vpack.c.b16 %v1143, %v1142
        %v1150 = vpack.c.b16 %v1145, %v1144
        %v1151 = vpack.c.b16 %v1147, %v1146
        %vm1156 = vcmask 523264
        %v1158 = vsel %vm1156, %v1109, 0
        %v1161 = vsel %vm1156, %v1110, 0
        %v1164 = vsel %vm1156, %v1111, 0
        %v1167 = vsel %vm1156, %v1112, 0
        %v1170 = vsel %vm1156, %v1113, 0
        %v1173 = vsel %vm1156, %v1114, 0
        %v1176 = vsel %vm1156, %v1115, 0
        %v1179 = vsel %vm1156, %v1116, 0
        %1181 = vmatprep.subr.bf16.mxu0 0
        %1182 = vmatpush1.bf16.msra.mxu0 %v1148
        %1183 = vmatprep.subr.bf16.mxu0 0
        %1184 = vmatpush1.bf16.msra.mxu0 %v1149
        %1185 = vmatprep.subr.bf16.mxu0 0
        %1186 = vmatpush1.bf16.msra.mxu0 %v1150
        %1187 = vmatprep.subr.bf16.mxu0 0
        %1188 = vmatpush1.bf16.msra.mxu0 %v1151
        %1189 = vmatprep.subr.bf16.mxu0 0
        %1190 = vmatpush1.bf16.msra.mxu0 0
        %1191 = vmatprep.subr.bf16.mxu0 0
        %1192 = vmatpush1.bf16.msra.mxu0 0
        %1193 = vmatprep.subr.bf16.mxu0 0
        %1194 = vmatpush1.bf16.msra.mxu0 0
        %1195 = vmatprep.subr.bf16.mxu0 0
        %1196 = vmatpush1.bf16.msra.mxu0 0
        %1197 = vmatprep.subr.bf16.mxu0 0
        %1198 = vmatpush1.bf16.msra.mxu0 0
        %1199 = vmatprep.subr.bf16.mxu0 0
        %1200 = vmatpush1.bf16.msra.mxu0 0
        %1201 = vmatprep.subr.bf16.mxu0 0
        %1202 = vmatpush1.bf16.msra.mxu0 0
        %1203 = vmatprep.subr.bf16.mxu0 0
        %1204 = vmatpush1.bf16.msra.mxu0 0
        %1205 = vmatprep.subr.bf16.mxu0 0
        %1206 = vmatpush1.bf16.msra.mxu0 0
        %1207 = vmatprep.subr.bf16.mxu0 0
        %1208 = vmatpush1.bf16.msra.mxu0 0
        %1209 = vmatprep.subr.bf16.mxu0 0
        %1210 = vmatpush1.bf16.msra.mxu0 0
        %1211 = vmatprep.subr.bf16.mxu0 0
        %1212 = vmatpush1.bf16.msra.mxu0 0
        %1213 = vmatprep.mubr.bf16.mxu0 0
        %1214 = vmatmul.mubr.bf16.gmra.mrb[0].mxu0 %v1158
        %v1215 = vpop.f32.mrb[0].mxu0
        %v1216 = vadd.f32 %v1130, %v1215
        %v1217 = vpop.f32.mrb[0].mxu0
        %v1218 = vpop.f32.mrb[0].mxu0
        %v1219 = vadd.f32 %v1130, %v1218
        %v1220 = vpop.f32.mrb[0].mxu0
        %1221 = vmatprep.mubr.bf16.mxu0 0
        %1222 = vmatmul.mubr.bf16.gmra.mrb[0].mxu0 %v1161
        %v1223 = vpop.f32.mrb[0].mxu0
        %v1224 = vadd.f32 %v1130, %v1223
        %v1225 = vpop.f32.mrb[0].mxu0
        %v1226 = vpop.f32.mrb[0].mxu0
        %v1227 = vadd.f32 %v1130, %v1226
        %v1228 = vpop.f32.mrb[0].mxu0
        %1229 = vmatprep.mubr.bf16.mxu0 0
        %1230 = vmatmul.mubr.bf16.gmra.mrb[0].mxu0 %v1164
        %v1231 = vpop.f32.mrb[0].mxu0
        %v1232 = vadd.f32 %v1130, %v1231
        %v1233 = vpop.f32.mrb[0].mxu0
        %v1234 = vpop.f32.mrb[0].mxu0
        %v1235 = vadd.f32 %v1130, %v1234
        %v1236 = vpop.f32.mrb[0].mxu0
        %1237 = vmatprep.mubr.bf16.mxu0 0
        %1238 = vmatmul.mubr.bf16.gmra.mrb[0].mxu0 %v1167
        %v1239 = vpop.f32.mrb[0].mxu0
        %v1240 = vadd.f32 %v1130, %v1239
        %v1241 = vpop.f32.mrb[0].mxu0
        %v1242 = vpop.f32.mrb[0].mxu0
        %v1243 = vadd.f32 %v1130, %v1242
        %v1244 = vpop.f32.mrb[0].mxu0
        %1245 = vmatprep.mubr.bf16.mxu0 0
        %1246 = vmatmul.mubr.bf16.gmra.mrb[0].mxu0 %v1170
        %v1247 = vpop.f32.mrb[0].mxu0
        %v1248 = vadd.f32 %v1130, %v1247
        %v1249 = vpop.f32.mrb[0].mxu0
        %v1250 = vpop.f32.mrb[0].mxu0
        %v1251 = vadd.f32 %v1130, %v1250
        %v1252 = vpop.f32.mrb[0].mxu0
        %1253 = vmatprep.mubr.bf16.mxu0 0
        %1254 = vmatmul.mubr.bf16.gmra.mrb[0].mxu0 %v1173
        %v1255 = vpop.f32.mrb[0].mxu0
        %v1256 = vadd.f32 %v1130, %v1255
        %v1257 = vpop.f32.mrb[0].mxu0
        %v1258 = vpop.f32.mrb[0].mxu0
        %v1259 = vadd.f32 %v1130, %v1258
        %v1260 = vpop.f32.mrb[0].mxu0
        %1261 = vmatprep.mubr.bf16.mxu0 0
        %1262 = vmatmul.mubr.bf16.gmra.mrb[0].mxu0 %v1176
        %v1263 = vpop.f32.mrb[0].mxu0
        %v1264 = vadd.f32 %v1130, %v1263
        %v1265 = vpop.f32.mrb[0].mxu0
        %v1266 = vpop.f32.mrb[0].mxu0
        %v1267 = vadd.f32 %v1130, %v1266
        %v1268 = vpop.f32.mrb[0].mxu0
        %1269 = vmatprep.mubr.bf16.mxu0 0
        %1270 = vmatmul.mubr.bf16.gmra.mrb[0].mxu0 %v1179
        %v1271 = vpop.f32.mrb[0].mxu0
        %v1272 = vadd.f32 %v1130, %v1271
        %v1273 = vpop.f32.mrb[0].mxu0
        %v1274 = vpop.f32.mrb[0].mxu0
        %v1275 = vadd.f32 %v1130, %v1274
        %v1276 = vpop.f32.mrb[0].mxu0
        %1277 = vdwg.mxu0
        %v1278 = vpack.c.bf16 %v1219, %v1216
        %v1279 = vpack.c.bf16 %v1227, %v1224
        %v1280 = vpack.c.bf16 %v1235, %v1232
        %v1281 = vpack.c.bf16 %v1243, %v1240
        %v1282 = vpack.c.bf16 %v1251, %v1248
        %v1283 = vpack.c.bf16 %v1259, %v1256
        %v1284 = vpack.c.bf16 %v1267, %v1264
        %v1285 = vpack.c.bf16 %v1275, %v1272
        %v1286 = vld [vmem:[#allocation2] sm:$0xf]
        %vm1287 = vcmask 64512
        %v1289 = vsel %vm1287, %v1278, 0
        %v1292 = vsel %vm1287, %v1279, 0
        %v1295 = vsel %vm1287, %v1280, 0
        %v1298 = vsel %vm1287, %v1281, 0
        %v1301 = vsel %vm1287, %v1282, 0
        %v1304 = vsel %vm1287, %v1283, 0
        %v1307 = vsel %vm1287, %v1284, 0
        %v1310 = vsel %vm1287, %v1285, 0
        %vm1312 = vcmask 1043456
        %v1314 = vsel %vm1312, %v1286, 0
        %1316 = vmatprep.subr.bf16.mxu0 0
        %1317 = vmatpush1.bf16.msra.mxu0 %v1314
        %1318 = vmatprep.subr.bf16.mxu0 0
        %1319 = vmatpush1.bf16.msra.mxu0 0
        %1320 = vmatprep.subr.bf16.mxu0 0
        %1321 = vmatpush1.bf16.msra.mxu0 0
        %1322 = vmatprep.subr.bf16.mxu0 0
        %1323 = vmatpush1.bf16.msra.mxu0 0
        %1324 = vmatprep.subr.bf16.mxu0 0
        %1325 = vmatpush1.bf16.msra.mxu0 0
        %1326 = vmatprep.subr.bf16.mxu0 0
        %1327 = vmatpush1.bf16.msra.mxu0 0
        %1328 = vmatprep.subr.bf16.mxu0 0
        %1329 = vmatpush1.bf16.msra.mxu0 0
        %1330 = vmatprep.subr.bf16.mxu0 0
        %1331 = vmatpush1.bf16.msra.mxu0 0
        %1332 = vmatprep.subr.bf16.mxu0 0
        %1333 = vmatpush1.bf16.msra.mxu0 0
        %1334 = vmatprep.subr.bf16.mxu0 0
        %1335 = vmatpush1.bf16.msra.mxu0 0
        %1336 = vmatprep.subr.bf16.mxu0 0
        %1337 = vmatpush1.bf16.msra.mxu0 0
        %1338 = vmatprep.subr.bf16.mxu0 0
        %1339 = vmatpush1.bf16.msra.mxu0 0
        %1340 = vmatprep.subr.bf16.mxu0 0
        %1341 = vmatpush1.bf16.msra.mxu0 0
        %1342 = vmatprep.subr.bf16.mxu0 0
        %1343 = vmatpush1.bf16.msra.mxu0 0
        %1344 = vmatprep.subr.bf16.mxu0 0
        %1345 = vmatpush1.bf16.msra.mxu0 0
        %1346 = vmatprep.subr.bf16.mxu0 0
        %1347 = vmatpush1.bf16.msra.mxu0 0
        %1348 = vmatprep.mubr.bf16.mxu0 0
        %1349 = vmatmul.mubr.bf16.gmra.mrb[0].mxu0 %v1289
        %v1350 = vpop.f32.mrb[0].mxu0
        %v1351 = vadd.f32 0.0, %v1350
        %v1352 = vpop.f32.mrb[0].mxu0
        %v1353 = vpop.f32.mrb[0].mxu0
        %v1354 = vadd.f32 0.0, %v1353
        %v1355 = vpop.f32.mrb[0].mxu0
        %1356 = vmatprep.mubr.bf16.mxu0 0
        %1357 = vmatmul.mubr.bf16.gmra.mrb[0].mxu0 %v1292
        %v1358 = vpop.f32.mrb[0].mxu0
        %v1359 = vadd.f32 0.0, %v1358
        %v1360 = vpop.f32.mrb[0].mxu0
        %v1361 = vpop.f32.mrb[0].mxu0
        %v1362 = vadd.f32 0.0, %v1361
        %v1363 = vpop.f32.mrb[0].mxu0
        %1364 = vmatprep.mubr.bf16.mxu0 0
        %1365 = vmatmul.mubr.bf16.gmra.mrb[0].mxu0 %v1295
        %v1366 = vpop.f32.mrb[0].mxu0
        %v1367 = vadd.f32 0.0, %v1366
        %v1368 = vpop.f32.mrb[0].mxu0
        %v1369 = vpop.f32.mrb[0].mxu0
        %v1370 = vadd.f32 0.0, %v1369
        %v1371 = vpop.f32.mrb[0].mxu0
        %1372 = vmatprep.mubr.bf16.mxu0 0
        %1373 = vmatmul.mubr.bf16.gmra.mrb[0].mxu0 %v1298
        %v1374 = vpop.f32.mrb[0].mxu0
        %v1375 = vadd.f32 0.0, %v1374
        %v1376 = vpop.f32.mrb[0].mxu0
        %v1377 = vpop.f32.mrb[0].mxu0
        %v1378 = vadd.f32 0.0, %v1377
        %v1379 = vpop.f32.mrb[0].mxu0
        %1380 = vmatprep.mubr.bf16.mxu0 0
        %1381 = vmatmul.mubr.bf16.gmra.mrb[0].mxu0 %v1301
        %v1382 = vpop.f32.mrb[0].mxu0
        %v1383 = vadd.f32 0.0, %v1382
        %v1384 = vpop.f32.mrb[0].mxu0
        %v1385 = vpop.f32.mrb[0].mxu0
        %v1386 = vadd.f32 0.0, %v1385
        %v1387 = vpop.f32.mrb[0].mxu0
        %1388 = vmatprep.mubr.bf16.mxu0 0
        %1389 = vmatmul.mubr.bf16.gmra.mrb[0].mxu0 %v1304
        %v1390 = vpop.f32.mrb[0].mxu0
        %v1391 = vadd.f32 0.0, %v1390
        %v1392 = vpop.f32.mrb[0].mxu0
        %v1393 = vpop.f32.mrb[0].mxu0
        %v1394 = vadd.f32 0.0, %v1393
        %v1395 = vpop.f32.mrb[0].mxu0
        %1396 = vmatprep.mubr.bf16.mxu0 0
        %1397 = vmatmul.mubr.bf16.gmra.mrb[0].mxu0 %v1307
        %v1398 = vpop.f32.mrb[0].mxu0
        %v1399 = vadd.f32 0.0, %v1398
        %v1400 = vpop.f32.mrb[0].mxu0
        %v1401 = vpop.f32.mrb[0].mxu0
        %v1402 = vadd.f32 0.0, %v1401
        %v1403 = vpop.f32.mrb[0].mxu0
        %1404 = vmatprep.mubr.bf16.mxu0 0
        %1405 = vmatmul.mubr.bf16.gmra.mrb[0].mxu0 %v1310
        %v1406 = vpop.f32.mrb[0].mxu0
        %v1407 = vadd.f32 0.0, %v1406
        %v1408 = vpop.f32.mrb[0].mxu0
        %v1409 = vpop.f32.mrb[0].mxu0
        %v1410 = vadd.f32 0.0, %v1409
        %v1411 = vpop.f32.mrb[0].mxu0
        %1412 = vdwg.mxu0
        %v1413 = vsel %vm1156, %v1351, -inf
        %1414 = vmax.xlane.f32.xlu0 %v1413
        %v1415 = vpop.xlane.xlu0 %1414
        %v1416 = vsel %vm1156, %v1354, -inf
        %1417 = vmax.xlane.f32.xlu0 %v1416
        %v1418 = vpop.xlane.xlu0 %1417
        %v1419 = vsel %vm1156, %v1359, -inf
        %1420 = vmax.xlane.f32.xlu0 %v1419
        %v1421 = vpop.xlane.xlu0 %1420
        %v1422 = vsel %vm1156, %v1362, -inf
        %1423 = vmax.xlane.f32.xlu0 %v1422
        %v1424 = vpop.xlane.xlu0 %1423
        %v1425 = vsel %vm1156, %v1367, -inf
        %1426 = vmax.xlane.f32.xlu0 %v1425
        %v1427 = vpop.xlane.xlu0 %1426
        %v1428 = vsel %vm1156, %v1370, -inf
        %1429 = vmax.xlane.f32.xlu0 %v1428
        %v1430 = vpop.xlane.xlu0 %1429
        %v1431 = vsel %vm1156, %v1375, -inf
        %1432 = vmax.xlane.f32.xlu0 %v1431
        %v1433 = vpop.xlane.xlu0 %1432
        %v1434 = vsel %vm1156, %v1378, -inf
        %1435 = vmax.xlane.f32.xlu0 %v1434
        %v1436 = vpop.xlane.xlu0 %1435
        %v1437 = vsel %vm1156, %v1383, -inf
        %1438 = vmax.xlane.f32.xlu0 %v1437
        %v1439 = vpop.xlane.xlu0 %1438
        %v1440 = vsel %vm1156, %v1386, -inf
        %1441 = vmax.xlane.f32.xlu0 %v1440
        %v1442 = vpop.xlane.xlu0 %1441
        %v1443 = vsel %vm1156, %v1391, -inf
        %1444 = vmax.xlane.f32.xlu0 %v1443
        %v1445 = vpop.xlane.xlu0 %1444
        %v1446 = vsel %vm1156, %v1394, -inf
        %1447 = vmax.xlane.f32.xlu0 %v1446
        %v1448 = vpop.xlane.xlu0 %1447
        %v1449 = vsel %vm1156, %v1399, -inf
        %1450 = vmax.xlane.f32.xlu0 %v1449
        %v1451 = vpop.xlane.xlu0 %1450
        %v1452 = vsel %vm1156, %v1402, -inf
        %1453 = vmax.xlane.f32.xlu0 %v1452
        %v1454 = vpop.xlane.xlu0 %1453
        %v1455 = vsel %vm1156, %v1407, -inf
        %1456 = vmax.xlane.f32.xlu0 %v1455
        %v1457 = vpop.xlane.xlu0 %1456
        %v1458 = vsel %vm1156, %v1410, -inf
        %1459 = vmax.xlane.f32.xlu0 %v1458
        %v1460 = vpop.xlane.xlu0 %1459
        %v1461 = vsub.f32 %v1351, %v1415
        %v1462 = vsub.f32 %v1354, %v1418
        %v1463 = vsub.f32 %v1359, %v1421
        %v1464 = vsub.f32 %v1362, %v1424
        %v1465 = vsub.f32 %v1367, %v1427
        %v1466 = vsub.f32 %v1370, %v1430
        %v1467 = vsub.f32 %v1375, %v1433
        %v1468 = vsub.f32 %v1378, %v1436
        %v1469 = vsub.f32 %v1383, %v1439
        %v1470 = vsub.f32 %v1386, %v1442
        %v1471 = vsub.f32 %v1391, %v1445
        %v1472 = vsub.f32 %v1394, %v1448
        %v1473 = vsub.f32 %v1399, %v1451
        %v1474 = vsub.f32 %v1402, %v1454
        %v1475 = vsub.f32 %v1407, %v1457
        %v1476 = vsub.f32 %v1410, %v1460
        %v1477 = vmul.f32 %v1461, 1.442695
        %v1478 = vpow.pop %v1477
        %v1479 = vmul.f32 %v1462, 1.442695
        %v1480 = vpow.pop %v1479
        %v1481 = vmul.f32 %v1463, 1.442695
        %v1482 = vpow.pop %v1481
        %v1483 = vmul.f32 %v1464, 1.442695
        %v1484 = vpow.pop %v1483
        %v1485 = vmul.f32 %v1465, 1.442695
        %v1486 = vpow.pop %v1485
        %v1487 = vmul.f32 %v1466, 1.442695
        %v1488 = vpow.pop %v1487
        %v1489 = vmul.f32 %v1467, 1.442695
        %v1490 = vpow.pop %v1489
        %v1491 = vmul.f32 %v1468, 1.442695
        %v1492 = vpow.pop %v1491
        %v1493 = vmul.f32 %v1469, 1.442695
        %v1494 = vpow.pop %v1493
        %v1495 = vmul.f32 %v1470, 1.442695
        %v1496 = vpow.pop %v1495
        %v1497 = vmul.f32 %v1471, 1.442695
        %v1498 = vpow.pop %v1497
        %v1499 = vmul.f32 %v1472, 1.442695
        %v1500 = vpow.pop %v1499
        %v1501 = vmul.f32 %v1473, 1.442695
        %v1502 = vpow.pop %v1501
        %v1503 = vmul.f32 %v1474, 1.442695
        %v1504 = vpow.pop %v1503
        %v1505 = vmul.f32 %v1475, 1.442695
        %v1506 = vpow.pop %v1505
        %v1507 = vmul.f32 %v1476, 1.442695
        %v1508 = vpow.pop %v1507
        %v1509 = vsel %vm1156, %v1478, 0.0
        %1510 = vadd.xlane.f32.xlu0 %v1509
        %v1511 = vpop.xlane.xlu0 %1510
        %v1512 = vsel %vm1156, %v1480, 0.0
        %1513 = vadd.xlane.f32.xlu0 %v1512
        %v1514 = vpop.xlane.xlu0 %1513
        %v1515 = vsel %vm1156, %v1482, 0.0
        %1516 = vadd.xlane.f32.xlu0 %v1515
        %v1517 = vpop.xlane.xlu0 %1516
        %v1518 = vsel %vm1156, %v1484, 0.0
        %1519 = vadd.xlane.f32.xlu0 %v1518
        %v1520 = vpop.xlane.xlu0 %1519
        %v1521 = vsel %vm1156, %v1486, 0.0
        %1522 = vadd.xlane.f32.xlu0 %v1521
        %v1523 = vpop.xlane.xlu0 %1522
        %v1524 = vsel %vm1156, %v1488, 0.0
        %1525 = vadd.xlane.f32.xlu0 %v1524
        %v1526 = vpop.xlane.xlu0 %1525
        %v1527 = vsel %vm1156, %v1490, 0.0
        %1528 = vadd.xlane.f32.xlu0 %v1527
        %v1529 = vpop.xlane.xlu0 %1528
        %v1530 = vsel %vm1156, %v1492, 0.0
        %1531 = vadd.xlane.f32.xlu0 %v1530
        %v1532 = vpop.xlane.xlu0 %1531
        %v1533 = vsel %vm1156, %v1494, 0.0
        %1534 = vadd.xlane.f32.xlu0 %v1533
        %v1535 = vpop.xlane.xlu0 %1534
        %v1536 = vsel %vm1156, %v1496, 0.0
        %1537 = vadd.xlane.f32.xlu0 %v1536
        %v1538 = vpop.xlane.xlu0 %1537
        %v1539 = vsel %vm1156, %v1498, 0.0
        %1540 = vadd.xlane.f32.xlu0 %v1539
        %v1541 = vpop.xlane.xlu0 %1540
        %v1542 = vsel %vm1156, %v1500, 0.0
        %1543 = vadd.xlane.f32.xlu0 %v1542
        %v1544 = vpop.xlane.xlu0 %1543
        %v1545 = vsel %vm1156, %v1502, 0.0
        %1546 = vadd.xlane.f32.xlu0 %v1545
        %v1547 = vpop.xlane.xlu0 %1546
        %v1548 = vsel %vm1156, %v1504, 0.0
        %1549 = vadd.xlane.f32.xlu0 %v1548
        %v1550 = vpop.xlane.xlu0 %1549
        %v1551 = vsel %vm1156, %v1506, 0.0
        %1552 = vadd.xlane.f32.xlu0 %v1551
        %v1553 = vpop.xlane.xlu0 %1552
        %v1554 = vsel %vm1156, %v1508, 0.0
        %1555 = vadd.xlane.f32.xlu0 %v1554
        %v1556 = vpop.xlane.xlu0 %1555
        %v1557 = vrcp.pop %v1511
        %v1558 = vrcp.pop %v1514
        %v1559 = vrcp.pop %v1517
        %v1560 = vrcp.pop %v1520
        %v1561 = vrcp.pop %v1523
        %v1562 = vrcp.pop %v1526
        %v1563 = vrcp.pop %v1529
        %v1564 = vrcp.pop %v1532
        %v1565 = vrcp.pop %v1535
        %v1566 = vrcp.pop %v1538
        %v1567 = vrcp.pop %v1541
        %v1568 = vrcp.pop %v1544
        %v1569 = vrcp.pop %v1547
        %v1570 = vrcp.pop %v1550
        %v1571 = vrcp.pop %v1553
        %v1572 = vrcp.pop %v1556
        %v1573 = vpack.c.bf16 %v1480, %v1478
        %v1574 = vpack.c.bf16 %v1484, %v1482
        %v1575 = vpack.c.bf16 %v1488, %v1486
        %v1576 = vpack.c.bf16 %v1492, %v1490
        %v1577 = vpack.c.bf16 %v1496, %v1494
        %v1578 = vpack.c.bf16 %v1500, %v1498
        %v1579 = vpack.c.bf16 %v1504, %v1502
        %v1580 = vpack.c.bf16 %v1508, %v1506
        %v1581 = vld [vmem:[#allocation3] sm:$0xff]
        %v1582 = vld [vmem:[#allocation3 + $0x8] sm:$0xff]
        %v1583 = vld [vmem:[#allocation3 + $0x10] sm:$0xff]
        %v1584 = vld [vmem:[#allocation3 + $0x18] sm:$0xff]
        %v1586 = vsel %vm1156, %v1573, 0
        %v1589 = vsel %vm1156, %v1574, 0
        %v1592 = vsel %vm1156, %v1575, 0
        %v1595 = vsel %vm1156, %v1576, 0
        %v1598 = vsel %vm1156, %v1577, 0
        %v1601 = vsel %vm1156, %v1578, 0
        %v1604 = vsel %vm1156, %v1579, 0
        %v1607 = vsel %vm1156, %v1580, 0
        %1609 = vmatprep.subr.bf16.mxu0 0
        %1610 = vmatpush1.bf16.msra.mxu0 %v1581
        %1611 = vmatprep.subr.bf16.mxu0 0
        %1612 = vmatpush1.bf16.msra.mxu0 %v1582
        %1613 = vmatprep.subr.bf16.mxu0 0
        %1614 = vmatpush1.bf16.msra.mxu0 %v1583
        %1615 = vmatprep.subr.bf16.mxu0 0
        %1616 = vmatpush1.bf16.msra.mxu0 %v1584
        %1617 = vmatprep.subr.bf16.mxu0 0
        %1618 = vmatpush1.bf16.msra.mxu0 0
        %1619 = vmatprep.subr.bf16.mxu0 0
        %1620 = vmatpush1.bf16.msra.mxu0 0
        %1621 = vmatprep.subr.bf16.mxu0 0
        %1622 = vmatpush1.bf16.msra.mxu0 0
        %1623 = vmatprep.subr.bf16.mxu0 0
        %1624 = vmatpush1.bf16.msra.mxu0 0
        %1625 = vmatprep.subr.bf16.mxu0 0
        %1626 = vmatpush1.bf16.msra.mxu0 0
        %1627 = vmatprep.subr.bf16.mxu0 0
        %1628 = vmatpush1.bf16.msra.mxu0 0
        %1629 = vmatprep.subr.bf16.mxu0 0
        %1630 = vmatpush1.bf16.msra.mxu0 0
        %1631 = vmatprep.subr.bf16.mxu0 0
        %1632 = vmatpush1.bf16.msra.mxu0 0
        %1633 = vmatprep.subr.bf16.mxu0 0
        %1634 = vmatpush1.bf16.msra.mxu0 0
        %1635 = vmatprep.subr.bf16.mxu0 0
        %1636 = vmatpush1.bf16.msra.mxu0 0
        %1637 = vmatprep.subr.bf16.mxu0 0
        %1638 = vmatpush1.bf16.msra.mxu0 0
        %1639 = vmatprep.subr.bf16.mxu0 0
        %1640 = vmatpush1.bf16.msra.mxu0 0
        %1641 = vmatprep.mubr.bf16.mxu0 0
        %1642 = vmatmul.mubr.bf16.gmra.mrb[0].mxu0 %v1586
        %v1643 = vpop.f32.mrb[0].mxu0
        %v1644 = vadd.f32 0.0, %v1643
        %v1645 = vpop.f32.mrb[0].mxu0
        %v1646 = vpop.f32.mrb[0].mxu0
        %v1647 = vadd.f32 0.0, %v1646
        %v1648 = vpop.f32.mrb[0].mxu0
        %1649 = vmatprep.mubr.bf16.mxu0 0
        %1650 = vmatmul.mubr.bf16.gmra.mrb[0].mxu0 %v1589
        %v1651 = vpop.f32.mrb[0].mxu0
        %v1652 = vadd.f32 0.0, %v1651
        %v1653 = vpop.f32.mrb[0].mxu0
        %v1654 = vpop.f32.mrb[0].mxu0
        %v1655 = vadd.f32 0.0, %v1654
        %v1656 = vpop.f32.mrb[0].mxu0
        %1657 = vmatprep.mubr.bf16.mxu0 0
        %1658 = vmatmul.mubr.bf16.gmra.mrb[0].mxu0 %v1592
        %v1659 = vpop.f32.mrb[0].mxu0
        %v1660 = vadd.f32 0.0, %v1659
        %v1661 = vpop.f32.mrb[0].mxu0
        %v1662 = vpop.f32.mrb[0].mxu0
        %v1663 = vadd.f32 0.0, %v1662
        %v1664 = vpop.f32.mrb[0].mxu0
        %1665 = vmatprep.mubr.bf16.mxu0 0
        %1666 = vmatmul.mubr.bf16.gmra.mrb[0].mxu0 %v1595
        %v1667 = vpop.f32.mrb[0].mxu0
        %v1668 = vadd.f32 0.0, %v1667
        %v1669 = vpop.f32.mrb[0].mxu0
        %v1670 = vpop.f32.mrb[0].mxu0
        %v1671 = vadd.f32 0.0, %v1670
        %v1672 = vpop.f32.mrb[0].mxu0
        %1673 = vmatprep.mubr.bf16.mxu0 0
        %1674 = vmatmul.mubr.bf16.gmra.mrb[0].mxu0 %v1598
        %v1675 = vpop.f32.mrb[0].mxu0
        %v1676 = vadd.f32 0.0, %v1675
        %v1677 = vpop.f32.mrb[0].mxu0
        %v1678 = vpop.f32.mrb[0].mxu0
        %v1679 = vadd.f32 0.0, %v1678
        %v1680 = vpop.f32.mrb[0].mxu0
        %1681 = vmatprep.mubr.bf16.mxu0 0
        %1682 = vmatmul.mubr.bf16.gmra.mrb[0].mxu0 %v1601
        %v1683 = vpop.f32.mrb[0].mxu0
        %v1684 = vadd.f32 0.0, %v1683
        %v1685 = vpop.f32.mrb[0].mxu0
        %v1686 = vpop.f32.mrb[0].mxu0
        %v1687 = vadd.f32 0.0, %v1686
        %v1688 = vpop.f32.mrb[0].mxu0
        %1689 = vmatprep.mubr.bf16.mxu0 0
        %1690 = vmatmul.mubr.bf16.gmra.mrb[0].mxu0 %v1604
        %v1691 = vpop.f32.mrb[0].mxu0
        %v1692 = vadd.f32 0.0, %v1691
        %v1693 = vpop.f32.mrb[0].mxu0
        %v1694 = vpop.f32.mrb[0].mxu0
        %v1695 = vadd.f32 0.0, %v1694
        %v1696 = vpop.f32.mrb[0].mxu0
        %1697 = vmatprep.mubr.bf16.mxu0 0
        %1698 = vmatmul.mubr.bf16.gmra.mrb[0].mxu0 %v1607
        %v1699 = vpop.f32.mrb[0].mxu0
        %v1700 = vadd.f32 0.0, %v1699
        %v1701 = vpop.f32.mrb[0].mxu0
        %v1702 = vpop.f32.mrb[0].mxu0
        %v1703 = vadd.f32 0.0, %v1702
        %v1704 = vpop.f32.mrb[0].mxu0
        %1705 = vdwg.mxu0
        %v1706 = vmul.f32 %v1644, %v1557
        %v1707 = vmul.f32 %v1647, %v1558
        %v1708 = vmul.f32 %v1652, %v1559
        %v1709 = vmul.f32 %v1655, %v1560
        %v1710 = vmul.f32 %v1660, %v1561
        %v1711 = vmul.f32 %v1663, %v1562
        %v1712 = vmul.f32 %v1668, %v1563
        %v1713 = vmul.f32 %v1671, %v1564
        %v1714 = vmul.f32 %v1676, %v1565
        %v1715 = vmul.f32 %v1679, %v1566
        %v1716 = vmul.f32 %v1684, %v1567
        %v1717 = vmul.f32 %v1687, %v1568
        %v1718 = vmul.f32 %v1692, %v1569
        %v1719 = vmul.f32 %v1695, %v1570
        %v1720 = vmul.f32 %v1700, %v1571
        %v1721 = vmul.f32 %v1703, %v1572
        %v1722 = vpack.c.bf16 %v1707, %v1706
        %v1723 = vpack.c.bf16 %v1709, %v1708
        %v1724 = vpack.c.bf16 %v1711, %v1710
        %v1725 = vpack.c.bf16 %v1713, %v1712
        %v1726 = vpack.c.bf16 %v1715, %v1714
        %v1727 = vpack.c.bf16 %v1717, %v1716
        %v1728 = vpack.c.bf16 %v1719, %v1718
        %v1729 = vpack.c.bf16 %v1721, %v1720
        %v1730 = vld [vmem:[#allocation16] sm:$0xf]
        %v1731 = vld [vmem:[#allocation16 + $0x4] sm:$0xf]
        %v1732 = vld [vmem:[#allocation16 + $0x8] sm:$0xf]
        %v1733 = vld [vmem:[#allocation16 + $0xc] sm:$0xf]
        %v1734 = vld [vmem:[#allocation18] sm:$0x1]
        %v1736 = vlaneseq
        %v1737 = vshrl.u32 %v1736, 7
        %v1738 = vsub.s32 0, %v1737
        %v1739 = vrot.slane %v1734, %v1738
        %v1745 = vunpack.c.l.b16 %v1730
        %v1746 = vunpack.c.l.b16 %v1731
        %v1747 = vunpack.c.l.b16 %v1732
        %v1748 = vunpack.c.l.b16 %v1733
        %v1749 = vpack.c.b16 %v1746, %v1745
        %v1750 = vpack.c.b16 %v1748, %v1747
        %vm1753 = vcmask 261120
        %v1755 = vsel %vm1753, %v1722, 0
        %v1758 = vsel %vm1753, %v1723, 0
        %v1761 = vsel %vm1753, %v1724, 0
        %v1764 = vsel %vm1753, %v1725, 0
        %v1767 = vsel %vm1753, %v1726, 0
        %v1770 = vsel %vm1753, %v1727, 0
        %v1773 = vsel %vm1753, %v1728, 0
        %v1776 = vsel %vm1753, %v1729, 0
        %1778 = vmatprep.subr.bf16.mxu0 0
        %1779 = vmatpush1.bf16.msra.mxu0 %v1749
        %1780 = vmatprep.subr.bf16.mxu0 0
        %1781 = vmatpush1.bf16.msra.mxu0 %v1750
        %1782 = vmatprep.subr.bf16.mxu0 0
        %1783 = vmatpush1.bf16.msra.mxu0 0
        %1784 = vmatprep.subr.bf16.mxu0 0
        %1785 = vmatpush1.bf16.msra.mxu0 0
        %1786 = vmatprep.subr.bf16.mxu0 0
        %1787 = vmatpush1.bf16.msra.mxu0 0
        %1788 = vmatprep.subr.bf16.mxu0 0
        %1789 = vmatpush1.bf16.msra.mxu0 0
        %1790 = vmatprep.subr.bf16.mxu0 0
        %1791 = vmatpush1.bf16.msra.mxu0 0
        %1792 = vmatprep.subr.bf16.mxu0 0
        %1793 = vmatpush1.bf16.msra.mxu0 0
        %1794 = vmatprep.subr.bf16.mxu0 0
        %1795 = vmatpush1.bf16.msra.mxu0 0
        %1796 = vmatprep.subr.bf16.mxu0 0
        %1797 = vmatpush1.bf16.msra.mxu0 0
        %1798 = vmatprep.subr.bf16.mxu0 0
        %1799 = vmatpush1.bf16.msra.mxu0 0
        %1800 = vmatprep.subr.bf16.mxu0 0
        %1801 = vmatpush1.bf16.msra.mxu0 0
        %1802 = vmatprep.subr.bf16.mxu0 0
        %1803 = vmatpush1.bf16.msra.mxu0 0
        %1804 = vmatprep.subr.bf16.mxu0 0
        %1805 = vmatpush1.bf16.msra.mxu0 0
        %1806 = vmatprep.subr.bf16.mxu0 0
        %1807 = vmatpush1.bf16.msra.mxu0 0
        %1808 = vmatprep.subr.bf16.mxu0 0
        %1809 = vmatpush1.bf16.msra.mxu0 0
        %1810 = vmatprep.mubr.bf16.mxu0 0
        %1811 = vmatmul.mubr.bf16.gmra.mrb[0].mxu0 %v1755
        %v1812 = vpop.f32.mrb[0].mxu0
        %v1813 = vadd.f32 %v1739, %v1812
        %v1814 = vpop.f32.mrb[0].mxu0
        %v1815 = vpop.f32.mrb[0].mxu0
        %v1816 = vadd.f32 %v1739, %v1815
        %v1817 = vpop.f32.mrb[0].mxu0
        %1818 = vmatprep.mubr.bf16.mxu0 0
        %1819 = vmatmul.mubr.bf16.gmra.mrb[0].mxu0 %v1758
        %v1820 = vpop.f32.mrb[0].mxu0
        %v1821 = vadd.f32 %v1739, %v1820
        %v1822 = vpop.f32.mrb[0].mxu0
        %v1823 = vpop.f32.mrb[0].mxu0
        %v1824 = vadd.f32 %v1739, %v1823
        %v1825 = vpop.f32.mrb[0].mxu0
        %1826 = vmatprep.mubr.bf16.mxu0 0
        %1827 = vmatmul.mubr.bf16.gmra.mrb[0].mxu0 %v1761
        %v1828 = vpop.f32.mrb[0].mxu0
        %v1829 = vadd.f32 %v1739, %v1828
        %v1830 = vpop.f32.mrb[0].mxu0
        %v1831 = vpop.f32.mrb[0].mxu0
        %v1832 = vadd.f32 %v1739, %v1831
        %v1833 = vpop.f32.mrb[0].mxu0
        %1834 = vmatprep.mubr.bf16.mxu0 0
        %1835 = vmatmul.mubr.bf16.gmra.mrb[0].mxu0 %v1764
        %v1836 = vpop.f32.mrb[0].mxu0
        %v1837 = vadd.f32 %v1739, %v1836
        %v1838 = vpop.f32.mrb[0].mxu0
        %v1839 = vpop.f32.mrb[0].mxu0
        %v1840 = vadd.f32 %v1739, %v1839
        %v1841 = vpop.f32.mrb[0].mxu0
        %1842 = vmatprep.mubr.bf16.mxu0 0
        %1843 = vmatmul.mubr.bf16.gmra.mrb[0].mxu0 %v1767
        %v1844 = vpop.f32.mrb[0].mxu0
        %v1845 = vadd.f32 %v1739, %v1844
        %v1846 = vpop.f32.mrb[0].mxu0
        %v1847 = vpop.f32.mrb[0].mxu0
        %v1848 = vadd.f32 %v1739, %v1847
        %v1849 = vpop.f32.mrb[0].mxu0
        %1850 = vmatprep.mubr.bf16.mxu0 0
        %1851 = vmatmul.mubr.bf16.gmra.mrb[0].mxu0 %v1770
        %v1852 = vpop.f32.mrb[0].mxu0
        %v1853 = vadd.f32 %v1739, %v1852
        %v1854 = vpop.f32.mrb[0].mxu0
        %v1855 = vpop.f32.mrb[0].mxu0
        %v1856 = vadd.f32 %v1739, %v1855
        %v1857 = vpop.f32.mrb[0].mxu0
        %1858 = vmatprep.mubr.bf16.mxu0 0
        %1859 = vmatmul.mubr.bf16.gmra.mrb[0].mxu0 %v1773
        %v1860 = vpop.f32.mrb[0].mxu0
        %v1861 = vadd.f32 %v1739, %v1860
        %v1862 = vpop.f32.mrb[0].mxu0
        %v1863 = vpop.f32.mrb[0].mxu0
        %v1864 = vadd.f32 %v1739, %v1863
        %v1865 = vpop.f32.mrb[0].mxu0
        %1866 = vmatprep.mubr.bf16.mxu0 0
        %1867 = vmatmul.mubr.bf16.gmra.mrb[0].mxu0 %v1776
        %v1868 = vpop.f32.mrb[0].mxu0
        %v1869 = vadd.f32 %v1739, %v1868
        %v1870 = vpop.f32.mrb[0].mxu0
        %v1871 = vpop.f32.mrb[0].mxu0
        %v1872 = vadd.f32 %v1739, %v1871
        %v1873 = vpop.f32.mrb[0].mxu0
        %1874 = vdwg.mxu0
        %v1875 = vadd.f32 %v1093, %v1813
        %v1876 = vadd.f32 %v1094, %v1816
        %v1877 = vadd.f32 %v1095, %v1821
        %v1878 = vadd.f32 %v1096, %v1824
        %v1879 = vadd.f32 %v1097, %v1829
        %v1880 = vadd.f32 %v1098, %v1832
        %v1881 = vadd.f32 %v1099, %v1837
        %v1882 = vadd.f32 %v1100, %v1840
        %v1883 = vadd.f32 %v1101, %v1845
        %v1884 = vadd.f32 %v1102, %v1848
        %v1885 = vadd.f32 %v1103, %v1853
        %v1886 = vadd.f32 %v1104, %v1856
        %v1887 = vadd.f32 %v1105, %v1861
        %v1888 = vadd.f32 %v1106, %v1864
        %v1889 = vadd.f32 %v1107, %v1869
        %v1890 = vadd.f32 %v1108, %v1872
        %1891 = vst.msk [vmem:[%s470] sm:$0xff] %vm1156, %v1875
        %1892 = vst.msk [vmem:[%s470 + $0x8] sm:$0xff] %vm1156, %v1876
        %1893 = vst.msk [vmem:[%s470 + $0x10] sm:$0xff] %vm1156, %v1877
        %1894 = vst.msk [vmem:[%s470 + $0x18] sm:$0xff] %vm1156, %v1878
        %1895 = vst.msk [vmem:[%s470 + $0x20] sm:$0xff] %vm1156, %v1879
        %1896 = vst.msk [vmem:[%s470 + $0x28] sm:$0xff] %vm1156, %v1880
        %1897 = vst.msk [vmem:[%s470 + $0x30] sm:$0xff] %vm1156, %v1881
        %1898 = vst.msk [vmem:[%s470 + $0x38] sm:$0xff] %vm1156, %v1882
        %1899 = vst.msk [vmem:[%s470 + $0x40] sm:$0xff] %vm1156, %v1883
        %1900 = vst.msk [vmem:[%s470 + $0x48] sm:$0xff] %vm1156, %v1884
        %1901 = vst.msk [vmem:[%s470 + $0x50] sm:$0xff] %vm1156, %v1885
        %1902 = vst.msk [vmem:[%s470 + $0x58] sm:$0xff] %vm1156, %v1886
        %1903 = vst.msk [vmem:[%s470 + $0x60] sm:$0xff] %vm1156, %v1887
        %1904 = vst.msk [vmem:[%s470 + $0x68] sm:$0xff] %vm1156, %v1888
        %1905 = vst.msk [vmem:[%s470 + $0x70] sm:$0xff] %vm1156, %v1889
        %1906 = vst.msk [vmem:[%s470 + $0x78] sm:$0xff] %vm1156, %v1890
        %s1907 = sand.u32 %s246, 1
        %s1908 = scalar_lea.sflag [#allocation6], %s1907
        %s1909 = sand.u32 %s246, 1
        %s1910 = smul.addr %s1909, 128
        %s1911 = scalar_lea.vmem [#allocation19], %s1910
        // Predicated region
        $region97: #{tpu_custom_call.1} parent=55 // pred_check
          %p1912 = pneg %p256
        $region98: #{tpu_custom_call.1} parent=55 // pred_check_branch
          %1914 = sbr.rel (%p1912) target = $region100
        $region99: #{tpu_custom_call.1} parent=55 // pred_region
          %s1915 = smul.u32 16, %s35
          %s1917 = ssub.s32 2048, 2048
          %1918 = vsyncadd %s1908, %s1917
          %s1919 = smul.addr %s34, 32
          %s1920 = sadd.s32 %s1915, %s1919
          %s1921 = smul.addr %s1920, 128
          %s1922 = scalar_lea.hbm %s9, %s1921
          %s1923 = sshll.u32 %s1911, 4
          %s1924 = int_to_ptr.vmem [resolvable:$true] %s1923
          %1929 = dma.vmem_to_hbm [thread:$0]  %s1924, 2048, %s1922, %s1908, 128, 128, 8
        $region100: #{tpu_custom_call.1} parent=55 // pred_fallthru
          _
      $region56: #{tpu_custom_call.1} parent=5 // pred_fallthru
        _
      %p1930 = scmp.le.s32.totalorder 2, %s25
      // Predicated region
      $region101: #{tpu_custom_call.1} parent=5 // pred_check
        %p1931 = pneg %p1930
      $region102: #{tpu_custom_call.1} parent=5 // pred_check_branch
        %1933 = sbr.rel (%p1931) target = $region104
      $region103: #{tpu_custom_call.1} parent=5 // pred_region
        %s1934 = ssub.s32 %s25, 2
        // Predicated region
        $region105: #{tpu_custom_call.1} parent=103 // pred_check
          %p1935 = pneg %p262
        $region106: #{tpu_custom_call.1} parent=103 // pred_check_branch
          %1937 = sbr.rel (%p1935) target = $region108
        $region107: #{tpu_custom_call.1} parent=103 // pred_region
          %s1938 = sand.u32 %s247, 1
          %s1939 = scalar_lea.sflag [#allocation6], %s1938
          %s1940 = sand.u32 %s247, 1
          %s1941 = smul.addr %s1940, 128
          %s1942 = scalar_lea.vmem [#allocation19], %s1941
          %1943 = dma.done %s1939, 2048
        $region108: #{tpu_custom_call.1} parent=103 // pred_fallthru
          _
      $region104: #{tpu_custom_call.1} parent=5 // pred_fallthru
        _
    $region6: #{tpu_custom_call.1} parent=1 // loop_footer
      %s29 = sadd.s32 1, %s25
    $region7: #{tpu_custom_call.1} parent=1 // loop_footer_branch
      %24 = sbr.rel target = $region3
    $region8: #{tpu_custom_call.1} parent=1 // loop_exit
      _
    %1944 = vsyncpa [#allocation5], 1
    %s1945 = scalar_lea.sflag [#allocation5], 1
    %1946 = vsyncpa %s1945, 1
    %1947 = vsyncpa [#allocation8], 1
    %1948 = vsyncpa [#allocation11], 1
    %1949 = vsyncpa [#allocation14], 1
    %1950 = vsyncpa [#allocation17], 1
    %1951 = vsyncpa [#allocation6], 1
    %s1952 = scalar_lea.sflag [#allocation6], 1
    %1953 = vsyncpa %s1952, 1

</llo_original>
